<compile_context>
chip_gen: v6e
topology: v6e:2x2x1
jax: 0.10.0
libtpu: 0.0.40
codegen_flags: <defaults>
</compile_context>

<pallas_src>
import jax
import jax.numpy as jnp
import numpy as np
from jax.experimental import pallas as pl
from jax.experimental.pallas import tpu as pltpu


def _round_up(x, m):
    return ((x + m - 1) // m) * m


def _make_kernel(Cp, H, W, PAD):
    HW = H * W

    def kernel(x_ref, w1_ref, b1_ref, w2_ref, b2_ref, out_ref,
               xpad_ref, y1pad_ref, im2col_ref):
        # x_ref      : (1, Cp, HW)       bf16  one image, channels x flat spatial
        # w1_ref     : (Cp, 9*Cp)        bf16  conv1 weights, BN1 scale folded in
        # b1_ref     : (Cp, 1)           f32   BN1 bias
        # w2_ref     : (Cp, 9*Cp)        bf16  conv2 weights, BN2 scale folded in
        # b2_ref     : (Cp, 1)           f32   BN2 bias
        # out_ref    : (1, Cp, HW)       f32   lane-dense output
        # xpad_ref   : (Cp, HW + 2*PAD)  bf16  flat-padded conv1 input (scratch)
        # y1pad_ref  : (Cp, HW + 2*PAD)  bf16  flat-padded conv2 input (scratch)
        # im2col_ref : (9*Cp, HW)        bf16  im2col staging (scratch)

        zeros_halo = jnp.zeros((Cp, PAD), jnp.bfloat16)

        # Unconditional halo zeroing every grid step (megacore-safe; strips are
        # small, lane-aligned, and free filler under the matmuls).
        xpad_ref[:, 0:PAD] = zeros_halo
        xpad_ref[:, PAD + HW:PAD + HW + PAD] = zeros_halo
        y1pad_ref[:, 0:PAD] = zeros_halo
        y1pad_ref[:, PAD + HW:PAD + HW + PAD] = zeros_halo

        # Stage the input into the flat-padded scratch.  PAD is a multiple of
        # 128, so this store (and the residual read below) is lane-aligned.
        xpad_ref[:, PAD:PAD + HW] = x_ref[0]

        # Column-validity masks for the dx = +-1 taps (row boundaries inside
        # the flattened spatial axis); dy = +-1 is handled by the zero halo.
        col = jax.lax.broadcasted_iota(jnp.int32, (1, HW), 1) % W
        not_left = col > 0            # reading (w - 1) is valid
        not_right = col < (W - 1)     # reading (w + 1) is valid
        zero = jnp.zeros((), jnp.bfloat16)

        def conv3x3(src_ref, wT, bias):
            # Assemble the (9*Cp, HW) bf16 im2col operand in VMEM, then ONE
            # MXU matmul with K = 9*Cp (f32 accumulation).
            for k in range(9):
                dy, dx = k // 3 - 1, k % 3 - 1
                s = PAD + dy * W + dx
                tap = src_ref[:, s:s + HW]           # (Cp, HW) bf16
                if dx == -1:
                    tap = jnp.where(not_left, tap, zero)
                elif dx == 1:
                    tap = jnp.where(not_right, tap, zero)
                im2col_ref[k * Cp:(k + 1) * Cp, :] = tap
            acc = jnp.dot(wT, im2col_ref[...],
                          preferred_element_type=jnp.float32)
            return acc + bias                        # (Cp, HW) f32

        # conv1 (BN1 scale folded into weights) + BN1 bias + relu
        y1 = jnp.maximum(conv3x3(xpad_ref, w1_ref[...], b1_ref[...]), 0.0)
        y1pad_ref[:, PAD:PAD + HW] = y1.astype(jnp.bfloat16)

        # conv2 (BN2 scale folded into weights) + BN2 bias
        y2 = conv3x3(y1pad_ref, w2_ref[...], b2_ref[...])

        # residual add (from the resident input block) + relu, in f32
        ident = x_ref[0].astype(jnp.float32)
        out_ref[0] = jnp.maximum(y2 + ident, 0.0)
        # TODO(synk): emit bf16 output instead when the consumer is the next
        # block's bf16 matmul (halves the largest HBM stream).

    return kernel


def bottleneck_forward(x_nchw, w1, s1, b1, w2, s2, b2):
    """Fused BottleneckOrigin forward (stride=1, groups=1, downsample=None).

    x_nchw : (B, C, H, W) f32
    w1     : (9, C, Cm)   conv1 3x3 weights, tap-major (k = ky*3 + kx)
    w2     : (9, Cm, Cm)  conv2 3x3 weights
    s*, b* : (Cm,)        folded inference-mode BatchNorm scale / bias
    conv3 / bn3 of the PyTorch module are dead code in forward() and omitted.
    """
    B, C, H, W = x_nchw.shape
    Cm = w1.shape[-1]
    assert C == Cm, "downsample=None requires inplanes == width"
    HW = H * W

    SUB = 16                        # bf16 sublane packing
    Cp = _round_up(C, SUB)          # channel pad -> full-sublane tap stores
    PAD = _round_up(W + 1, 128)     # lane-aligned flat-spatial halo
    HWp = HW + 2 * PAD

    # NCHW -> (B, C, H*W) is a free reshape; the flat spatial axis sits on
    # lanes.  bf16 activations halve the input DMA bytes.
    xf = x_nchw.reshape(B, C, HW).astype(jnp.bfloat16)
    if Cp != C:
        xf = jnp.pad(xf, ((0, 0), (0, Cp - C), (0, 0)))

    # Fold the BN scale into the conv weights (conv is linear), pad channels,
    # cast to bf16; only the BN bias remains in-kernel.
    w1s = w1 * s1[None, None, :]
    w2s = w2 * s2[None, None, :]
    w1p = jnp.pad(w1s, ((0, 0), (0, Cp - C), (0, Cp - Cm)))
    w2p = jnp.pad(w2s, ((0, 0), (0, Cp - Cm), (0, Cp - Cm)))
    w1t = jnp.transpose(w1p, (2, 0, 1)).reshape(Cp, 9 * Cp).astype(jnp.bfloat16)
    w2t = jnp.transpose(w2p, (2, 0, 1)).reshape(Cp, 9 * Cp).astype(jnp.bfloat16)
    b1c = jnp.pad(b1, (0, Cp - Cm)).reshape(Cp, 1).astype(jnp.float32)
    b2c = jnp.pad(b2, (0, Cp - Cm)).reshape(Cp, 1).astype(jnp.float32)

    kernel = _make_kernel(Cp, H, W, PAD)

    out = pl.pallas_call(
        kernel,
        out_shape=jax.ShapeDtypeStruct((B, Cp, HW), jnp.float32),
        grid=(B,),
        in_specs=[
            pl.BlockSpec((1, Cp, HW), lambda b: (b, 0, 0)),
            pl.BlockSpec((Cp, 9 * Cp), lambda b: (0, 0)),
            pl.BlockSpec((Cp, 1), lambda b: (0, 0)),
            pl.BlockSpec((Cp, 9 * Cp), lambda b: (0, 0)),
            pl.BlockSpec((Cp, 1), lambda b: (0, 0)),
        ],
        out_specs=pl.BlockSpec((1, Cp, HW), lambda b: (b, 0, 0)),
        scratch_shapes=[
            pltpu.VMEM((Cp, HWp), jnp.bfloat16),     # flat-padded conv1 input
            pltpu.VMEM((Cp, HWp), jnp.bfloat16),     # flat-padded conv2 input
            pltpu.VMEM((9 * Cp, HW), jnp.bfloat16),  # im2col staging
        ],
        compiler_params=pltpu.CompilerParams(
            dimension_semantics=("parallel",),
            vmem_limit_bytes=32 * 1024 * 1024),
        # TODO(synk): at production ResNet shapes (e.g. C=256, H=W=56) tile
        # spatially (grid over H strips with a 1-row halo) so live VMEM stays
        # inside v7x's 64 MiB / v5e's 16 MiB scoped budget; on v7x also prefer
        # 9 accumulating dots (MRB) over im2col staging.
    )(xf, w1t, b1c, w2t, b2c)

    return out[:, :Cm, :].reshape(B, Cm, H, W)


def _reference(x_nchw, w1, s1, b1, w2, s2, b2):
    """Pure-JAX/XLA reference with the same numerics as the kernel:
    BN scale folded into bf16 weights, f32 accumulation, bf16 y1 roundtrip."""
    x = jnp.transpose(x_nchw, (0, 2, 3, 1)).astype(jnp.bfloat16)   # NHWC
    C = x.shape[-1]
    Cm = w1.shape[-1]
    w1h = (w1 * s1[None, None, :]).astype(jnp.bfloat16).reshape(3, 3, C, Cm)
    w2h = (w2 * s2[None, None, :]).astype(jnp.bfloat16).reshape(3, 3, Cm, Cm)
    dn = ('NHWC', 'HWIO', 'NHWC')
    y1 = jax.lax.conv_general_dilated(x, w1h, (1, 1), 'SAME',
                                      dimension_numbers=dn,
                                      preferred_element_type=jnp.float32) + b1
    y1 = jnp.maximum(y1, 0.0)
    y2 = jax.lax.conv_general_dilated(y1.astype(jnp.bfloat16), w2h, (1, 1),
                                      'SAME', dimension_numbers=dn,
                                      preferred_element_type=jnp.float32) + b2
    out = jnp.maximum(y2 + x.astype(jnp.float32), 0.0)
    return jnp.transpose(out, (0, 3, 1, 2))


if __name__ == "__main__":
    # inplanes = planes = width = 4 (defaults: stride=1, groups=1, base_width=64)
    B, C, H, W = 2, 4, 16, 16
    key = jax.random.PRNGKey(0)
    k1, k2, k3, k4, k5, k6, k7 = jax.random.split(key, 7)

    x = jax.random.normal(k1, (B, C, H, W), jnp.float32)

    Cm = C
    # conv weights stored as (9, Cin, Cout) == (ky*3 + kx, Cin, Cout)
    w1 = 0.2 * jax.random.normal(k2, (9, C, Cm), jnp.float32)
    w2 = 0.2 * jax.random.normal(k3, (9, Cm, Cm), jnp.float32)

    eps = 1e-5
    gamma1 = 1.0 + 0.1 * jax.random.normal(k4, (Cm,), jnp.float32)
    beta1 = 0.1 * jax.random.normal(k5, (Cm,), jnp.float32)
    mean1 = 0.05 * jnp.arange(Cm, dtype=jnp.float32)
    var1 = 1.0 + 0.1 * jnp.arange(Cm, dtype=jnp.float32)
    s1 = gamma1 / jnp.sqrt(var1 + eps)
    b1 = beta1 - mean1 * s1

    gamma2 = 1.0 + 0.1 * jax.random.normal(k6, (Cm,), jnp.float32)
    beta2 = 0.1 * jax.random.normal(k7, (Cm,), jnp.float32)
    mean2 = -0.03 * jnp.arange(Cm, dtype=jnp.float32)
    var2 = 1.0 + 0.05 * jnp.arange(Cm, dtype=jnp.float32)
    s2 = gamma2 / jnp.sqrt(var2 + eps)
    b2 = beta2 - mean2 * s2

    out = jax.block_until_ready(bottleneck_forward(x, w1, s1, b1, w2, s2, b2))
    ref = jax.block_until_ready(_reference(x, w1, s1, b1, w2, s2, b2))

    # bf16 matmul inputs on both sides (f32 accumulation on both sides), so a
    # modest tolerance covers accumulation-order differences only.
    np.testing.assert_allclose(np.asarray(out), np.asarray(ref),
                               rtol=2e-2, atol=2e-2)
    print("KERNEL_OK")
</pallas_src>

<mosaic_0001>
module attributes {stable_mosaic.version = 11 : i64} {
  func.func @kernel(%arg0: i32, %arg1: memref<1x16x256xbf16, #tpu.memory_space<vmem>>, %arg2: memref<16x144xbf16, #tpu.memory_space<vmem>>, %arg3: memref<16x1xf32, #tpu.memory_space<vmem>>, %arg4: memref<16x144xbf16, #tpu.memory_space<vmem>>, %arg5: memref<16x1xf32, #tpu.memory_space<vmem>>, %arg6: memref<1x16x256xf32, #tpu.memory_space<vmem>>, %arg7: memref<16x512xbf16, #tpu.memory_space<vmem>>, %arg8: memref<16x512xbf16, #tpu.memory_space<vmem>>, %arg9: memref<144x256xbf16, #tpu.memory_space<vmem>>) attributes {dimension_semantics = [#tpu.dimension_semantics<parallel>], iteration_bounds = array<i64: 2>, scalar_prefetch = 0 : i64, scratch_operands = 3 : i64, tpu.core_type = #tpu.core_type<tc>, window_params = [{transform_indices = @transform_0, window_bounds = array<i64: 1, 16, 256>}, {pipeline_mode = #tpu.pipeline_mode<synchronous>, transform_indices = @transform_1, window_bounds = array<i64: 16, 144>}, {pipeline_mode = #tpu.pipeline_mode<synchronous>, transform_indices = @transform_2, window_bounds = array<i64: 16, 1>}, {pipeline_mode = #tpu.pipeline_mode<synchronous>, transform_indices = @transform_3, window_bounds = array<i64: 16, 144>}, {pipeline_mode = #tpu.pipeline_mode<synchronous>, transform_indices = @transform_4, window_bounds = array<i64: 16, 1>}, {transform_indices = @transform_5, window_bounds = array<i64: 1, 16, 256>}]} {
    %cst = arith.constant 0.000000e+00 : bf16
    %0 = vector.broadcast %cst : bf16 to vector<16x128xbf16>
    %c0 = arith.constant 0 : index
    %c0_0 = arith.constant 0 : index
    %1 = vector.load %arg7[%c0, %c0_0] : memref<16x512xbf16, #tpu.memory_space<vmem>>, vector<16x128xbf16>
    tpu.vector_store %arg7[%c0, %c0_0], %0 {strides = array<i32>} : memref<16x512xbf16, #tpu.memory_space<vmem>>, vector<16x128xbf16>,
    %c0_1 = arith.constant 0 : index
    %c384 = arith.constant 384 : index
    %2 = vector.load %arg7[%c0_1, %c384] : memref<16x512xbf16, #tpu.memory_space<vmem>>, vector<16x128xbf16>
    tpu.vector_store %arg7[%c0_1, %c384], %0 {strides = array<i32>} : memref<16x512xbf16, #tpu.memory_space<vmem>>, vector<16x128xbf16>,
    %c0_2 = arith.constant 0 : index
    %c0_3 = arith.constant 0 : index
    %3 = vector.load %arg8[%c0_2, %c0_3] : memref<16x512xbf16, #tpu.memory_space<vmem>>, vector<16x128xbf16>
    tpu.vector_store %arg8[%c0_2, %c0_3], %0 {strides = array<i32>} : memref<16x512xbf16, #tpu.memory_space<vmem>>, vector<16x128xbf16>,
    %c0_4 = arith.constant 0 : index
    %c384_5 = arith.constant 384 : index
    %4 = vector.load %arg8[%c0_4, %c384_5] : memref<16x512xbf16, #tpu.memory_space<vmem>>, vector<16x128xbf16>
    tpu.vector_store %arg8[%c0_4, %c384_5], %0 {strides = array<i32>} : memref<16x512xbf16, #tpu.memory_space<vmem>>, vector<16x128xbf16>,
    %c0_6 = arith.constant 0 : index
    %c0_7 = arith.constant 0 : index
    %c0_8 = arith.constant 0 : index
    %5 = vector.load %arg1[%c0_6, %c0_7, %c0_8] : memref<1x16x256xbf16, #tpu.memory_space<vmem>>, vector<1x16x256xbf16>
    %6 = vector.shape_cast %5 : vector<1x16x256xbf16> to vector<16x256xbf16>
    %c0_9 = arith.constant 0 : index
    %c128 = arith.constant 128 : index
    %7 = vector.load %arg7[%c0_9, %c128] : memref<16x512xbf16, #tpu.memory_space<vmem>>, vector<16x256xbf16>
    tpu.vector_store %arg7[%c0_9, %c128], %6 {strides = array<i32>} : memref<16x512xbf16, #tpu.memory_space<vmem>>, vector<16x256xbf16>,
    %8 = tpu.iota {dimensions = array<i32: 1>} : vector<1x256xi32>
    %c16_i32 = arith.constant 16 : i32
    %c0_i32 = arith.constant 0 : i32
    %9 = arith.cmpi eq, %c16_i32, %c0_i32 : i32
    %c1_i32 = arith.constant 1 : i32
    %10 = arith.select %9, %c1_i32, %c16_i32 : i32
    %11 = vector.broadcast %10 : i32 to vector<1x256xi32>
    %12 = arith.remsi %8, %11 : vector<1x256xi32>
    %c0_i32_10 = arith.constant 0 : i32
    %13 = vector.broadcast %c0_i32_10 : i32 to vector<1x256xi32>
    %14 = arith.cmpi ne, %12, %13 : vector<1x256xi32>
    %c0_i32_11 = arith.constant 0 : i32
    %15 = vector.broadcast %c0_i32_11 : i32 to vector<1x256xi32>
    %16 = arith.cmpi slt, %12, %15 : vector<1x256xi32>
    %c0_i32_12 = arith.constant 0 : i32
    %17 = arith.cmpi slt, %10, %c0_i32_12 : i32
    %18 = vector.broadcast %17 : i1 to vector<1x256xi1>
    %19 = vector.broadcast %18 : vector<1x256xi1> to vector<1x256xi1>
    %20 = arith.xori %16, %19 : vector<1x256xi1>
    %21 = arith.andi %20, %14 : vector<1x256xi1>
    %22 = vector.broadcast %10 : i32 to vector<1x256xi32>
    %23 = arith.addi %12, %22 : vector<1x256xi32>
    %24 = arith.select %21, %23, %12 : vector<1x256xi1>, vector<1x256xi32>
    %c0_i32_13 = arith.constant 0 : i32
    %25 = vector.broadcast %c0_i32_13 : i32 to vector<1x256xi32>
    %26 = arith.cmpi sgt, %24, %25 : vector<1x256xi32>
    %c15_i32 = arith.constant 15 : i32
    %27 = vector.broadcast %c15_i32 : i32 to vector<1x256xi32>
    %28 = arith.cmpi slt, %24, %27 : vector<1x256xi32>
    %c0_14 = arith.constant 0 : index
    %c0_15 = arith.constant 0 : index
    %29 = vector.load %arg2[%c0_14, %c0_15] : memref<16x144xbf16, #tpu.memory_space<vmem>>, vector<16x144xbf16>
    %c0_16 = arith.constant 0 : index
    %c0_17 = arith.constant 0 : index
    %30 = vector.load %arg3[%c0_16, %c0_17] : memref<16x1xf32, #tpu.memory_space<vmem>>, vector<16x1xf32>
    %c0_18 = arith.constant 0 : index
    %c111 = arith.constant 111 : index
    %31 = vector.load %arg7[%c0_18, %c111] : memref<16x512xbf16, #tpu.memory_space<vmem>>, vector<16x256xbf16>
    %cst_19 = arith.constant 0.000000e+00 : bf16
    %32 = vector.shape_cast %26 : vector<1x256xi1> to vector<1x256xi1>
    %33 = vector.broadcast %32 : vector<1x256xi1> to vector<16x256xi1>
    %34 = vector.broadcast %cst_19 : bf16 to vector<16x256xbf16>
    %35 = arith.select %33, %31, %34 : vector<16x256xi1>, vector<16x256xbf16>
    %c0_20 = arith.constant 0 : index
    %c0_21 = arith.constant 0 : index
    %36 = vector.load %arg9[%c0_20, %c0_21] : memref<144x256xbf16, #tpu.memory_space<vmem>>, vector<16x256xbf16>
    tpu.vector_store %arg9[%c0_20, %c0_21], %35 {strides = array<i32>} : memref<144x256xbf16, #tpu.memory_space<vmem>>, vector<16x256xbf16>,
    %c0_22 = arith.constant 0 : index
    %c112 = arith.constant 112 : index
    %37 = vector.load %arg7[%c0_22, %c112] : memref<16x512xbf16, #tpu.memory_space<vmem>>, vector<16x256xbf16>
    %c16 = arith.constant 16 : index
    %c0_23 = arith.constant 0 : index
    %38 = vector.load %arg9[%c16, %c0_23] : memref<144x256xbf16, #tpu.memory_space<vmem>>, vector<16x256xbf16>
    tpu.vector_store %arg9[%c16, %c0_23], %37 {strides = array<i32>} : memref<144x256xbf16, #tpu.memory_space<vmem>>, vector<16x256xbf16>,
    %c0_24 = arith.constant 0 : index
    %c113 = arith.constant 113 : index
    %39 = vector.load %arg7[%c0_24, %c113] : memref<16x512xbf16, #tpu.memory_space<vmem>>, vector<16x256xbf16>
    %cst_25 = arith.constant 0.000000e+00 : bf16
    %40 = vector.shape_cast %28 : vector<1x256xi1> to vector<1x256xi1>
    %41 = vector.broadcast %40 : vector<1x256xi1> to vector<16x256xi1>
    %42 = vector.broadcast %cst_25 : bf16 to vector<16x256xbf16>
    %43 = arith.select %41, %39, %42 : vector<16x256xi1>, vector<16x256xbf16>
    %c32 = arith.constant 32 : index
    %c0_26 = arith.constant 0 : index
    %44 = vector.load %arg9[%c32, %c0_26] : memref<144x256xbf16, #tpu.memory_space<vmem>>, vector<16x256xbf16>
    tpu.vector_store %arg9[%c32, %c0_26], %43 {strides = array<i32>} : memref<144x256xbf16, #tpu.memory_space<vmem>>, vector<16x256xbf16>,
    %c0_27 = arith.constant 0 : index
    %c127 = arith.constant 127 : index
    %45 = vector.load %arg7[%c0_27, %c127] : memref<16x512xbf16, #tpu.memory_space<vmem>>, vector<16x256xbf16>
    %cst_28 = arith.constant 0.000000e+00 : bf16
    %46 = vector.shape_cast %26 : vector<1x256xi1> to vector<1x256xi1>
    %47 = vector.broadcast %46 : vector<1x256xi1> to vector<16x256xi1>
    %48 = vector.broadcast %cst_28 : bf16 to vector<16x256xbf16>
    %49 = arith.select %47, %45, %48 : vector<16x256xi1>, vector<16x256xbf16>
    %c48 = arith.constant 48 : index
    %c0_29 = arith.constant 0 : index
    %50 = vector.load %arg9[%c48, %c0_29] : memref<144x256xbf16, #tpu.memory_space<vmem>>, vector<16x256xbf16>
    tpu.vector_store %arg9[%c48, %c0_29], %49 {strides = array<i32>} : memref<144x256xbf16, #tpu.memory_space<vmem>>, vector<16x256xbf16>,
    %c0_30 = arith.constant 0 : index
    %c128_31 = arith.constant 128 : index
    %51 = vector.load %arg7[%c0_30, %c128_31] : memref<16x512xbf16, #tpu.memory_space<vmem>>, vector<16x256xbf16>
    %c64 = arith.constant 64 : index
    %c0_32 = arith.constant 0 : index
    %52 = vector.load %arg9[%c64, %c0_32] : memref<144x256xbf16, #tpu.memory_space<vmem>>, vector<16x256xbf16>
    tpu.vector_store %arg9[%c64, %c0_32], %51 {strides = array<i32>} : memref<144x256xbf16, #tpu.memory_space<vmem>>, vector<16x256xbf16>,
    %c0_33 = arith.constant 0 : index
    %c129 = arith.constant 129 : index
    %53 = vector.load %arg7[%c0_33, %c129] : memref<16x512xbf16, #tpu.memory_space<vmem>>, vector<16x256xbf16>
    %cst_34 = arith.constant 0.000000e+00 : bf16
    %54 = vector.shape_cast %28 : vector<1x256xi1> to vector<1x256xi1>
    %55 = vector.broadcast %54 : vector<1x256xi1> to vector<16x256xi1>
    %56 = vector.broadcast %cst_34 : bf16 to vector<16x256xbf16>
    %57 = arith.select %55, %53, %56 : vector<16x256xi1>, vector<16x256xbf16>
    %c80 = arith.constant 80 : index
    %c0_35 = arith.constant 0 : index
    %58 = vector.load %arg9[%c80, %c0_35] : memref<144x256xbf16, #tpu.memory_space<vmem>>, vector<16x256xbf16>
    tpu.vector_store %arg9[%c80, %c0_35], %57 {strides = array<i32>} : memref<144x256xbf16, #tpu.memory_space<vmem>>, vector<16x256xbf16>,
    %c0_36 = arith.constant 0 : index
    %c143 = arith.constant 143 : index
    %59 = vector.load %arg7[%c0_36, %c143] : memref<16x512xbf16, #tpu.memory_space<vmem>>, vector<16x256xbf16>
    %cst_37 = arith.constant 0.000000e+00 : bf16
    %60 = vector.shape_cast %26 : vector<1x256xi1> to vector<1x256xi1>
    %61 = vector.broadcast %60 : vector<1x256xi1> to vector<16x256xi1>
    %62 = vector.broadcast %cst_37 : bf16 to vector<16x256xbf16>
    %63 = arith.select %61, %59, %62 : vector<16x256xi1>, vector<16x256xbf16>
    %c96 = arith.constant 96 : index
    %c0_38 = arith.constant 0 : index
    %64 = vector.load %arg9[%c96, %c0_38] : memref<144x256xbf16, #tpu.memory_space<vmem>>, vector<16x256xbf16>
    tpu.vector_store %arg9[%c96, %c0_38], %63 {strides = array<i32>} : memref<144x256xbf16, #tpu.memory_space<vmem>>, vector<16x256xbf16>,
    %c0_39 = arith.constant 0 : index
    %c144 = arith.constant 144 : index
    %65 = vector.load %arg7[%c0_39, %c144] : memref<16x512xbf16, #tpu.memory_space<vmem>>, vector<16x256xbf16>
    %c112_40 = arith.constant 112 : index
    %c0_41 = arith.constant 0 : index
    %66 = vector.load %arg9[%c112_40, %c0_41] : memref<144x256xbf16, #tpu.memory_space<vmem>>, vector<16x256xbf16>
    tpu.vector_store %arg9[%c112_40, %c0_41], %65 {strides = array<i32>} : memref<144x256xbf16, #tpu.memory_space<vmem>>, vector<16x256xbf16>,
    %c0_42 = arith.constant 0 : index
    %c145 = arith.constant 145 : index
    %67 = vector.load %arg7[%c0_42, %c145] : memref<16x512xbf16, #tpu.memory_space<vmem>>, vector<16x256xbf16>
    %cst_43 = arith.constant 0.000000e+00 : bf16
    %68 = vector.shape_cast %28 : vector<1x256xi1> to vector<1x256xi1>
    %69 = vector.broadcast %68 : vector<1x256xi1> to vector<16x256xi1>
    %70 = vector.broadcast %cst_43 : bf16 to vector<16x256xbf16>
    %71 = arith.select %69, %67, %70 : vector<16x256xi1>, vector<16x256xbf16>
    %c128_44 = arith.constant 128 : index
    %c0_45 = arith.constant 0 : index
    %72 = vector.load %arg9[%c128_44, %c0_45] : memref<144x256xbf16, #tpu.memory_space<vmem>>, vector<16x256xbf16>
    tpu.vector_store %arg9[%c128_44, %c0_45], %71 {strides = array<i32>} : memref<144x256xbf16, #tpu.memory_space<vmem>>, vector<16x256xbf16>,
    %c0_46 = arith.constant 0 : index
    %c0_47 = arith.constant 0 : index
    %73 = vector.load %arg9[%c0_46, %c0_47] : memref<144x256xbf16, #tpu.memory_space<vmem>>, vector<144x256xbf16>
    %cst_48 = arith.constant dense<0.000000e+00> : vector<16x256xf32>
    %74 = tpu.matmul %29, %73, %cst_48 {dimension_numbers = #tpu.dot_dimension_numbers<[1], [0], [0], [1], [0, 0, 1, 1], [], []>} : vector<16x144xbf16>, vector<144x256xbf16>, vector<16x256xf32> -> vector<16x256xf32>
    %75 = vector.broadcast %30 : vector<16x1xf32> to vector<16x256xf32>
    %76 = arith.addf %74, %75 : vector<16x256xf32>
    %cst_49 = arith.constant 0.000000e+00 : f32
    %77 = vector.broadcast %cst_49 : f32 to vector<16x256xf32>
    %78 = arith.maximumf %76, %77 : vector<16x256xf32>
    %79 = arith.truncf %78 : vector<16x256xf32> to vector<16x256xbf16>
    %c0_50 = arith.constant 0 : index
    %c128_51 = arith.constant 128 : index
    %80 = vector.load %arg8[%c0_50, %c128_51] : memref<16x512xbf16, #tpu.memory_space<vmem>>, vector<16x256xbf16>
    tpu.vector_store %arg8[%c0_50, %c128_51], %79 {strides = array<i32>} : memref<16x512xbf16, #tpu.memory_space<vmem>>, vector<16x256xbf16>,
    %c0_52 = arith.constant 0 : index
    %c0_53 = arith.constant 0 : index
    %81 = vector.load %arg4[%c0_52, %c0_53] : memref<16x144xbf16, #tpu.memory_space<vmem>>, vector<16x144xbf16>
    %c0_54 = arith.constant 0 : index
    %c0_55 = arith.constant 0 : index
    %82 = vector.load %arg5[%c0_54, %c0_55] : memref<16x1xf32, #tpu.memory_space<vmem>>, vector<16x1xf32>
    %c0_56 = arith.constant 0 : index
    %c111_57 = arith.constant 111 : index
    %83 = vector.load %arg8[%c0_56, %c111_57] : memref<16x512xbf16, #tpu.memory_space<vmem>>, vector<16x256xbf16>
    %cst_58 = arith.constant 0.000000e+00 : bf16
    %84 = vector.shape_cast %26 : vector<1x256xi1> to vector<1x256xi1>
    %85 = vector.broadcast %84 : vector<1x256xi1> to vector<16x256xi1>
    %86 = vector.broadcast %cst_58 : bf16 to vector<16x256xbf16>
    %87 = arith.select %85, %83, %86 : vector<16x256xi1>, vector<16x256xbf16>
    %c0_59 = arith.constant 0 : index
    %c0_60 = arith.constant 0 : index
    %88 = vector.load %arg9[%c0_59, %c0_60] : memref<144x256xbf16, #tpu.memory_space<vmem>>, vector<16x256xbf16>
    tpu.vector_store %arg9[%c0_59, %c0_60], %87 {strides = array<i32>} : memref<144x256xbf16, #tpu.memory_space<vmem>>, vector<16x256xbf16>,
    %c0_61 = arith.constant 0 : index
    %c112_62 = arith.constant 112 : index
    %89 = vector.load %arg8[%c0_61, %c112_62] : memref<16x512xbf16, #tpu.memory_space<vmem>>, vector<16x256xbf16>
    %c16_63 = arith.constant 16 : index
    %c0_64 = arith.constant 0 : index
    %90 = vector.load %arg9[%c16_63, %c0_64] : memref<144x256xbf16, #tpu.memory_space<vmem>>, vector<16x256xbf16>
    tpu.vector_store %arg9[%c16_63, %c0_64], %89 {strides = array<i32>} : memref<144x256xbf16, #tpu.memory_space<vmem>>, vector<16x256xbf16>,
    %c0_65 = arith.constant 0 : index
    %c113_66 = arith.constant 113 : index
    %91 = vector.load %arg8[%c0_65, %c113_66] : memref<16x512xbf16, #tpu.memory_space<vmem>>, vector<16x256xbf16>
    %cst_67 = arith.constant 0.000000e+00 : bf16
    %92 = vector.shape_cast %28 : vector<1x256xi1> to vector<1x256xi1>
    %93 = vector.broadcast %92 : vector<1x256xi1> to vector<16x256xi1>
    %94 = vector.broadcast %cst_67 : bf16 to vector<16x256xbf16>
    %95 = arith.select %93, %91, %94 : vector<16x256xi1>, vector<16x256xbf16>
    %c32_68 = arith.constant 32 : index
    %c0_69 = arith.constant 0 : index
    %96 = vector.load %arg9[%c32_68, %c0_69] : memref<144x256xbf16, #tpu.memory_space<vmem>>, vector<16x256xbf16>
    tpu.vector_store %arg9[%c32_68, %c0_69], %95 {strides = array<i32>} : memref<144x256xbf16, #tpu.memory_space<vmem>>, vector<16x256xbf16>,
    %c0_70 = arith.constant 0 : index
    %c127_71 = arith.constant 127 : index
    %97 = vector.load %arg8[%c0_70, %c127_71] : memref<16x512xbf16, #tpu.memory_space<vmem>>, vector<16x256xbf16>
    %cst_72 = arith.constant 0.000000e+00 : bf16
    %98 = vector.shape_cast %26 : vector<1x256xi1> to vector<1x256xi1>
    %99 = vector.broadcast %98 : vector<1x256xi1> to vector<16x256xi1>
    %100 = vector.broadcast %cst_72 : bf16 to vector<16x256xbf16>
    %101 = arith.select %99, %97, %100 : vector<16x256xi1>, vector<16x256xbf16>
    %c48_73 = arith.constant 48 : index
    %c0_74 = arith.constant 0 : index
    %102 = vector.load %arg9[%c48_73, %c0_74] : memref<144x256xbf16, #tpu.memory_space<vmem>>, vector<16x256xbf16>
    tpu.vector_store %arg9[%c48_73, %c0_74], %101 {strides = array<i32>} : memref<144x256xbf16, #tpu.memory_space<vmem>>, vector<16x256xbf16>,
    %c0_75 = arith.constant 0 : index
    %c128_76 = arith.constant 128 : index
    %103 = vector.load %arg8[%c0_75, %c128_76] : memref<16x512xbf16, #tpu.memory_space<vmem>>, vector<16x256xbf16>
    %c64_77 = arith.constant 64 : index
    %c0_78 = arith.constant 0 : index
    %104 = vector.load %arg9[%c64_77, %c0_78] : memref<144x256xbf16, #tpu.memory_space<vmem>>, vector<16x256xbf16>
    tpu.vector_store %arg9[%c64_77, %c0_78], %103 {strides = array<i32>} : memref<144x256xbf16, #tpu.memory_space<vmem>>, vector<16x256xbf16>,
    %c0_79 = arith.constant 0 : index
    %c129_80 = arith.constant 129 : index
    %105 = vector.load %arg8[%c0_79, %c129_80] : memref<16x512xbf16, #tpu.memory_space<vmem>>, vector<16x256xbf16>
    %cst_81 = arith.constant 0.000000e+00 : bf16
    %106 = vector.shape_cast %28 : vector<1x256xi1> to vector<1x256xi1>
    %107 = vector.broadcast %106 : vector<1x256xi1> to vector<16x256xi1>
    %108 = vector.broadcast %cst_81 : bf16 to vector<16x256xbf16>
    %109 = arith.select %107, %105, %108 : vector<16x256xi1>, vector<16x256xbf16>
    %c80_82 = arith.constant 80 : index
    %c0_83 = arith.constant 0 : index
    %110 = vector.load %arg9[%c80_82, %c0_83] : memref<144x256xbf16, #tpu.memory_space<vmem>>, vector<16x256xbf16>
    tpu.vector_store %arg9[%c80_82, %c0_83], %109 {strides = array<i32>} : memref<144x256xbf16, #tpu.memory_space<vmem>>, vector<16x256xbf16>,
    %c0_84 = arith.constant 0 : index
    %c143_85 = arith.constant 143 : index
    %111 = vector.load %arg8[%c0_84, %c143_85] : memref<16x512xbf16, #tpu.memory_space<vmem>>, vector<16x256xbf16>
    %cst_86 = arith.constant 0.000000e+00 : bf16
    %112 = vector.shape_cast %26 : vector<1x256xi1> to vector<1x256xi1>
    %113 = vector.broadcast %112 : vector<1x256xi1> to vector<16x256xi1>
    %114 = vector.broadcast %cst_86 : bf16 to vector<16x256xbf16>
    %115 = arith.select %113, %111, %114 : vector<16x256xi1>, vector<16x256xbf16>
    %c96_87 = arith.constant 96 : index
    %c0_88 = arith.constant 0 : index
    %116 = vector.load %arg9[%c96_87, %c0_88] : memref<144x256xbf16, #tpu.memory_space<vmem>>, vector<16x256xbf16>
    tpu.vector_store %arg9[%c96_87, %c0_88], %115 {strides = array<i32>} : memref<144x256xbf16, #tpu.memory_space<vmem>>, vector<16x256xbf16>,
    %c0_89 = arith.constant 0 : index
    %c144_90 = arith.constant 144 : index
    %117 = vector.load %arg8[%c0_89, %c144_90] : memref<16x512xbf16, #tpu.memory_space<vmem>>, vector<16x256xbf16>
    %c112_91 = arith.constant 112 : index
    %c0_92 = arith.constant 0 : index
    %118 = vector.load %arg9[%c112_91, %c0_92] : memref<144x256xbf16, #tpu.memory_space<vmem>>, vector<16x256xbf16>
    tpu.vector_store %arg9[%c112_91, %c0_92], %117 {strides = array<i32>} : memref<144x256xbf16, #tpu.memory_space<vmem>>, vector<16x256xbf16>,
    %c0_93 = arith.constant 0 : index
    %c145_94 = arith.constant 145 : index
    %119 = vector.load %arg8[%c0_93, %c145_94] : memref<16x512xbf16, #tpu.memory_space<vmem>>, vector<16x256xbf16>
    %cst_95 = arith.constant 0.000000e+00 : bf16
    %120 = vector.shape_cast %28 : vector<1x256xi1> to vector<1x256xi1>
    %121 = vector.broadcast %120 : vector<1x256xi1> to vector<16x256xi1>
    %122 = vector.broadcast %cst_95 : bf16 to vector<16x256xbf16>
    %123 = arith.select %121, %119, %122 : vector<16x256xi1>, vector<16x256xbf16>
    %c128_96 = arith.constant 128 : index
    %c0_97 = arith.constant 0 : index
    %124 = vector.load %arg9[%c128_96, %c0_97] : memref<144x256xbf16, #tpu.memory_space<vmem>>, vector<16x256xbf16>
    tpu.vector_store %arg9[%c128_96, %c0_97], %123 {strides = array<i32>} : memref<144x256xbf16, #tpu.memory_space<vmem>>, vector<16x256xbf16>,
    %c0_98 = arith.constant 0 : index
    %c0_99 = arith.constant 0 : index
    %125 = vector.load %arg9[%c0_98, %c0_99] : memref<144x256xbf16, #tpu.memory_space<vmem>>, vector<144x256xbf16>
    %cst_100 = arith.constant dense<0.000000e+00> : vector<16x256xf32>
    %126 = tpu.matmul %81, %125, %cst_100 {dimension_numbers = #tpu.dot_dimension_numbers<[1], [0], [0], [1], [0, 0, 1, 1], [], []>} : vector<16x144xbf16>, vector<144x256xbf16>, vector<16x256xf32> -> vector<16x256xf32>
    %127 = vector.broadcast %82 : vector<16x1xf32> to vector<16x256xf32>
    %128 = arith.addf %126, %127 : vector<16x256xf32>
    %c0_101 = arith.constant 0 : index
    %c0_102 = arith.constant 0 : index
    %c0_103 = arith.constant 0 : index
    %129 = vector.load %arg1[%c0_101, %c0_102, %c0_103] : memref<1x16x256xbf16, #tpu.memory_space<vmem>>, vector<1x16x256xbf16>
    %130 = vector.shape_cast %129 : vector<1x16x256xbf16> to vector<16x256xbf16>
    %131 = arith.extf %130 : vector<16x256xbf16> to vector<16x256xf32>
    %132 = arith.addf %128, %131 : vector<16x256xf32>
    %cst_104 = arith.constant 0.000000e+00 : f32
    %133 = vector.broadcast %cst_104 : f32 to vector<16x256xf32>
    %134 = arith.maximumf %132, %133 : vector<16x256xf32>
    %c0_105 = arith.constant 0 : index
    %c0_106 = arith.constant 0 : index
    %c0_107 = arith.constant 0 : index
    %135 = vector.load %arg6[%c0_105, %c0_106, %c0_107] : memref<1x16x256xf32, #tpu.memory_space<vmem>>, vector<1x16x256xf32>
    %136 = vector.shape_cast %135 : vector<1x16x256xf32> to vector<16x256xf32>
    %137 = vector.shape_cast %134 : vector<16x256xf32> to vector<1x16x256xf32>
    tpu.vector_store %arg6[%c0_105, %c0_106, %c0_107], %137 {strides = array<i32>} : memref<1x16x256xf32, #tpu.memory_space<vmem>>, vector<1x16x256xf32>,
    return
  }
  func.func @transform_0(%arg0: i32) -> (i32, i32, i32) {
    %c0_i32 = arith.constant 0 : i32
    %c0_i32_0 = arith.constant 0 : i32
    %c0_i32_1 = arith.constant 0 : i32
    return %arg0, %c0_i32, %c0_i32_0 : i32, i32, i32
  }
  func.func @transform_1(%arg0: i32) -> (i32, i32) {
    %c0_i32 = arith.constant 0 : i32
    %c0_i32_0 = arith.constant 0 : i32
    %c0_i32_1 = arith.constant 0 : i32
    return %c0_i32, %c0_i32_0 : i32, i32
  }
  func.func @transform_2(%arg0: i32) -> (i32, i32) {
    %c0_i32 = arith.constant 0 : i32
    %c0_i32_0 = arith.constant 0 : i32
    %c0_i32_1 = arith.constant 0 : i32
    return %c0_i32, %c0_i32_0 : i32, i32
  }
  func.func @transform_3(%arg0: i32) -> (i32, i32) {
    %c0_i32 = arith.constant 0 : i32
    %c0_i32_0 = arith.constant 0 : i32
    %c0_i32_1 = arith.constant 0 : i32
    return %c0_i32, %c0_i32_0 : i32, i32
  }
  func.func @transform_4(%arg0: i32) -> (i32, i32) {
    %c0_i32 = arith.constant 0 : i32
    %c0_i32_0 = arith.constant 0 : i32
    %c0_i32_1 = arith.constant 0 : i32
    return %c0_i32, %c0_i32_0 : i32, i32
  }
  func.func @transform_5(%arg0: i32) -> (i32, i32, i32) {
    %c0_i32 = arith.constant 0 : i32
    %c0_i32_0 = arith.constant 0 : i32
    %c0_i32_1 = arith.constant 0 : i32
    return %arg0, %c0_i32, %c0_i32_0 : i32, i32, i32
  }
}

</mosaic_0001>

<llo_original>
// kernel: tpu_custom_call.1
$region0: #{tpu_custom_call.1}
  #allocation0 [shape = 'u32[]', space=smem, size = 0x4, offset = 0x4, fixed_abs, tag = 'smem constant byte address 0x4 - core index']
  #allocation1 [shape = 'u32[144,128]{1,0:T(1,128)}', space=vmem, size = 0x12000, scoped, tag = 'internal scratch']
  #allocation2 [shape = 'bf16[16,512]{1,0:T(8,128)(2,1)}', space=vmem, size = 0x4000, scoped, tag = 'scratch operand']
  #allocation3 [shape = 'bf16[16,512]{1,0:T(8,128)(2,1)}', space=vmem, size = 0x4000, scoped, tag = 'scratch operand']
  #allocation4 [shape = 'bf16[144,256]{1,0:T(8,128)(2,1)}', space=vmem, size = 0x12000, scoped, tag = 'scratch operand']
  %s0 = inlined_call_operand.vmem [shape: bf16[2,16,256], index: 0, kind: input, shape index: {}]
  %s1 = inlined_call_operand.hbm [shape: bf16[16,144], index: 1, kind: input, shape index: {}]
  %s2 = inlined_call_operand.vmem [shape: f32[16,1], index: 2, kind: input, shape index: {}]
  %s3 = inlined_call_operand.hbm [shape: bf16[16,144], index: 3, kind: input, shape index: {}]
  %s4 = inlined_call_operand.vmem [shape: f32[16,1], index: 4, kind: input, shape index: {}]
  %s5 = inlined_call_operand.hbm [shape: f32[2,16,256], index: 5, kind: output, shape index: {}]
  %s6 = sld [smem:[#allocation0]]
  $region61: #{tpu_custom_call.1} parent=0
    _
  %s8 = ssub.s32 1, %s6
  %s9 = scalar_select 0, %s8, %s6
  $region1: #{tpu_custom_call.1} parent=0
    #allocation5 [shape = 'u8[8192]{0}', space=vmem, size = 0x2000, scoped, tag = 'input window, operand 1, single buffered']
    #allocation6 [shape = 's32[2]{0}', space=sflag, size = 0x8, scoped, tag = 'scoped memory for tpu_custom_call.1']
    #allocation7 [shape = 's32[2]{0}', space=sflag, size = 0x8, scoped, tag = 'scoped memory for tpu_custom_call.1']
    #allocation8 [shape = 'u8[8192]{0}', space=vmem, size = 0x2000, scoped, tag = 'input window, operand 3, single buffered']
    #allocation9 [shape = 's32[1]{0}', space=sflag, size = 0x4, scoped, tag = 'scoped memory for tpu_custom_call.1']
    #allocation10 [shape = 'u8[32768]{0}', space=vmem, size = 0x8000, scoped, tag = 'output window, operand 0']
    %10 = vsyncpa [#allocation6], 0
    %11 = vsyncpa [#allocation9], 0
    %12 = vsyncpa [#allocation7], 0
    %s13 = scalar_lea.sflag [#allocation7], 1
    %14 = vsyncpa %s13, 0
    loop: start=0, step=1, limit=4
    $region2: #{tpu_custom_call.1} parent=1 // loop_pre_header
      _
    $region3: #{tpu_custom_call.1} parent=1 // loop_header
      %s16 = sphi 0, %s20
      %p17 = scmp.ge.s32.totalorder %s16, 4
      %s26 = sphi 0, %s28
      %s29 = sphi 0, %s26
      %s30 = sphi 0, %s29
      %s46 = sphi 0, %s30
      %s50 = sphi 0, %s50
      %s52 = sphi 0, %s50
      %s53 = sphi 0, %s52
      %s67 = sphi 0, %s53
      %s71 = sphi 0, %s71
      %s73 = sphi 0, %s71
      %s74 = sphi 0, %s73
      %s88 = sphi 0, %s74
      %s92 = sphi 0, %s92
      %s94 = sphi 0, %s92
      %s95 = sphi 0, %s94
      %s109 = sphi 0, %s95
      %s113 = sphi 0, %s113
      %s115 = sphi 0, %s113
      %s116 = sphi 0, %s115
      %s130 = sphi 0, %s116
      %s136 = sphi 0, %s138
      %s139 = sphi 0, %s136
      %s140 = sphi 0, %s139
      %s156 = sphi 0, %s140
    $region4: #{tpu_custom_call.1} parent=1 // loop_header_branch
      %19 = sbr.rel (%p17) target = $region8
    $region5: #{tpu_custom_call.1} parent=1 // loop_body
      %s21 = ssub.s32 %s16, 1
      %s22 = ssub.s32 %s16, 2
      %s23 = sadd.s32 %s16, 1
      %s24 = ssub.s32 %s16, %s23
      %p25 = scmp.eq.s32.totalorder %s24, 0
      %s27 = sadd.s32 %s26, 1
      %s28 = scalar_select %p25, %s26, %s27
      %p31 = pneg %p25
      %p32 = scmp.eq.s32.totalorder %s16, 1
      %p33 = por %p31, %p32
      %p34 = scmp.ne.s32.totalorder %s26, %s29
      %p35 = scmp.eq.s32.totalorder %s16, 0
      %p36 = por %p34, %p35
      %p37 = scmp.ne.s32.totalorder %s26, %s29
      %p38 = scmp.eq.s32.totalorder %s21, 1
      %p39 = por %p37, %p38
      %p40 = scmp.ne.s32.totalorder %s29, %s30
      %p41 = scmp.eq.s32.totalorder %s21, 0
      %p42 = por %p40, %p41
      %p43 = scmp.ne.s32.totalorder %s29, %s30
      %p44 = scmp.eq.s32.totalorder %s22, 1
      %p45 = por %p43, %p44
      %p47 = scmp.ne.s32.totalorder %s30, %s46
      %p48 = scmp.eq.s32.totalorder %s22, 0
      %p49 = por %p47, %p48
      %s51 = sadd.s32 %s50, 1
      %p54 = scmp.eq.s32.totalorder %s16, 1
      %p55 = scmp.ne.s32.totalorder %s50, %s52
      %p56 = scmp.eq.s32.totalorder %s16, 0
      %p57 = por %p55, %p56
      %p58 = scmp.ne.s32.totalorder %s50, %s52
      %p59 = scmp.eq.s32.totalorder %s21, 1
      %p60 = por %p58, %p59
      %p61 = scmp.ne.s32.totalorder %s52, %s53
      %p62 = scmp.eq.s32.totalorder %s21, 0
      %p63 = por %p61, %p62
      %p64 = scmp.ne.s32.totalorder %s52, %s53
      %p65 = scmp.eq.s32.totalorder %s22, 1
      %p66 = por %p64, %p65
      %p68 = scmp.ne.s32.totalorder %s53, %s67
      %p69 = scmp.eq.s32.totalorder %s22, 0
      %p70 = por %p68, %p69
      %s72 = sadd.s32 %s71, 1
      %p75 = scmp.eq.s32.totalorder %s16, 1
      %p76 = scmp.ne.s32.totalorder %s71, %s73
      %p77 = scmp.eq.s32.totalorder %s16, 0
      %p78 = por %p76, %p77
      %p79 = scmp.ne.s32.totalorder %s71, %s73
      %p80 = scmp.eq.s32.totalorder %s21, 1
      %p81 = por %p79, %p80
      %p82 = scmp.ne.s32.totalorder %s73, %s74
      %p83 = scmp.eq.s32.totalorder %s21, 0
      %p84 = por %p82, %p83
      %p85 = scmp.ne.s32.totalorder %s73, %s74
      %p86 = scmp.eq.s32.totalorder %s22, 1
      %p87 = por %p85, %p86
      %p89 = scmp.ne.s32.totalorder %s74, %s88
      %p90 = scmp.eq.s32.totalorder %s22, 0
      %p91 = por %p89, %p90
      %s93 = sadd.s32 %s92, 1
      %p96 = scmp.eq.s32.totalorder %s16, 1
      %p97 = scmp.ne.s32.totalorder %s92, %s94
      %p98 = scmp.eq.s32.totalorder %s16, 0
      %p99 = por %p97, %p98
      %p100 = scmp.ne.s32.totalorder %s92, %s94
      %p101 = scmp.eq.s32.totalorder %s21, 1
      %p102 = por %p100, %p101
      %p103 = scmp.ne.s32.totalorder %s94, %s95
      %p104 = scmp.eq.s32.totalorder %s21, 0
      %p105 = por %p103, %p104
      %p106 = scmp.ne.s32.totalorder %s94, %s95
      %p107 = scmp.eq.s32.totalorder %s22, 1
      %p108 = por %p106, %p107
      %p110 = scmp.ne.s32.totalorder %s95, %s109
      %p111 = scmp.eq.s32.totalorder %s22, 0
      %p112 = por %p110, %p111
      %s114 = sadd.s32 %s113, 1
      %p117 = scmp.eq.s32.totalorder %s16, 1
      %p118 = scmp.ne.s32.totalorder %s113, %s115
      %p119 = scmp.eq.s32.totalorder %s16, 0
      %p120 = por %p118, %p119
      %p121 = scmp.ne.s32.totalorder %s113, %s115
      %p122 = scmp.eq.s32.totalorder %s21, 1
      %p123 = por %p121, %p122
      %p124 = scmp.ne.s32.totalorder %s115, %s116
      %p125 = scmp.eq.s32.totalorder %s21, 0
      %p126 = por %p124, %p125
      %p127 = scmp.ne.s32.totalorder %s115, %s116
      %p128 = scmp.eq.s32.totalorder %s22, 1
      %p129 = por %p127, %p128
      %p131 = scmp.ne.s32.totalorder %s116, %s130
      %p132 = scmp.eq.s32.totalorder %s22, 0
      %p133 = por %p131, %p132
      %s134 = ssub.s32 %s16, %s23
      %p135 = scmp.eq.s32.totalorder %s134, 0
      %s137 = sadd.s32 %s136, 1
      %s138 = scalar_select %p135, %s136, %s137
      %p141 = pneg %p135
      %p142 = scmp.eq.s32.totalorder %s16, 1
      %p143 = por %p141, %p142
      %p144 = scmp.ne.s32.totalorder %s136, %s139
      %p145 = scmp.eq.s32.totalorder %s16, 0
      %p146 = por %p144, %p145
      %p147 = scmp.ne.s32.totalorder %s136, %s139
      %p148 = scmp.eq.s32.totalorder %s21, 1
      %p149 = por %p147, %p148
      %p150 = scmp.ne.s32.totalorder %s139, %s140
      %p151 = scmp.eq.s32.totalorder %s21, 0
      %p152 = por %p150, %p151
      %p153 = scmp.ne.s32.totalorder %s139, %s140
      %p154 = scmp.eq.s32.totalorder %s22, 1
      %p155 = por %p153, %p154
      %p157 = scmp.ne.s32.totalorder %s140, %s156
      %p158 = scmp.eq.s32.totalorder %s22, 0
      %p159 = por %p157, %p158
      %p160 = scmp.le.s32.totalorder 1, %s16
      %p161 = scmp.lt.s32.totalorder %s16, 3
      %p162 = pnand %p160, %p161
      %p163 = pneg %p162
      // Predicated region
      $region9: #{tpu_custom_call.1} parent=5 // pred_check
        _
      $region10: #{tpu_custom_call.1} parent=5 // pred_check_branch
        %165 = sbr.rel (%p162) target = $region12
      $region11: #{tpu_custom_call.1} parent=5 // pred_region
        %s166 = ssub.s32 %s16, 1
        // Predicated region
        $region13: #{tpu_custom_call.1} parent=11 // pred_check
          %p167 = pneg %p63
        $region14: #{tpu_custom_call.1} parent=11 // pred_check_branch
          %169 = sbr.rel (%p167) target = $region16
        $region15: #{tpu_custom_call.1} parent=11 // pred_region
          %s171 = ssub.s32 256, 256
          %172 = vsyncadd [#allocation6], %s171
          %s173 = sshll.u32 [#allocation5], 4
          %s174 = int_to_ptr.vmem [resolvable:$true] %s173
          %179 = dma.hbm_to_vmem [thread:$0]  %s1, 256, %s174, [#allocation6], 128, 128, 8
        $region16: #{tpu_custom_call.1} parent=11 // pred_fallthru
          _
        // Predicated region
        $region17: #{tpu_custom_call.1} parent=11 // pred_check
          %p180 = pneg %p84
        $region18: #{tpu_custom_call.1} parent=11 // pred_check_branch
          %182 = sbr.rel (%p180) target = $region20
        $region19: #{tpu_custom_call.1} parent=11 // pred_region
          _
        $region20: #{tpu_custom_call.1} parent=11 // pred_fallthru
          _
        // Predicated region
        $region21: #{tpu_custom_call.1} parent=11 // pred_check
          %p183 = pneg %p105
        $region22: #{tpu_custom_call.1} parent=11 // pred_check_branch
          %185 = sbr.rel (%p183) target = $region24
        $region23: #{tpu_custom_call.1} parent=11 // pred_region
          %s187 = ssub.s32 256, 256
          %188 = vsyncadd [#allocation9], %s187
          %s189 = sshll.u32 [#allocation8], 4
          %s190 = int_to_ptr.vmem [resolvable:$true] %s189
          %195 = dma.hbm_to_vmem [thread:$0]  %s3, 256, %s190, [#allocation9], 128, 128, 8
        $region24: #{tpu_custom_call.1} parent=11 // pred_fallthru
          _
        // Predicated region
        $region25: #{tpu_custom_call.1} parent=11 // pred_check
          %p196 = pneg %p126
        $region26: #{tpu_custom_call.1} parent=11 // pred_check_branch
          %198 = sbr.rel (%p196) target = $region28
        $region27: #{tpu_custom_call.1} parent=11 // pred_region
          _
        $region28: #{tpu_custom_call.1} parent=11 // pred_fallthru
          _
      $region12: #{tpu_custom_call.1} parent=5 // pred_fallthru
        _
      %p199 = scmp.lt.s32.totalorder %s16, 2
      // Predicated region
      $region29: #{tpu_custom_call.1} parent=5 // pred_check
        %p200 = pneg %p199
      $region30: #{tpu_custom_call.1} parent=5 // pred_check_branch
        %202 = sbr.rel (%p200) target = $region32
      $region31: #{tpu_custom_call.1} parent=5 // pred_region
        // Predicated region
        $region33: #{tpu_custom_call.1} parent=31 // pred_check
          %p203 = pneg %p36
        $region34: #{tpu_custom_call.1} parent=31 // pred_check_branch
          %205 = sbr.rel (%p203) target = $region36
        $region35: #{tpu_custom_call.1} parent=31 // pred_region
          %p206 = scmp.lt.s32.totalorder %s16, 1
          %s207 = scalar_select %p206, %s16, 1
          %s208 = smul.addr %s207, 4
          %s209 = smul.addr %s208, 4
          %s210 = scalar_lea.vmem %s0, %s209
        $region36: #{tpu_custom_call.1} parent=31 // pred_fallthru
          _
      $region32: #{tpu_custom_call.1} parent=5 // pred_fallthru
        _
      %p211 = scmp.le.s32.totalorder 1, %s16
      %p212 = scmp.lt.s32.totalorder %s16, 3
      %p213 = pnand %p211, %p212
      %p214 = pneg %p213
      // Predicated region
      $region37: #{tpu_custom_call.1} parent=5 // pred_check
        _
      $region38: #{tpu_custom_call.1} parent=5 // pred_check_branch
        %216 = sbr.rel (%p213) target = $region40
      $region39: #{tpu_custom_call.1} parent=5 // pred_region
        %s217 = ssub.s32 %s16, 1
        // Predicated region
        $region41: #{tpu_custom_call.1} parent=39 // pred_check
          %p218 = pneg %p63
        $region42: #{tpu_custom_call.1} parent=39 // pred_check_branch
          %220 = sbr.rel (%p218) target = $region44
        $region43: #{tpu_custom_call.1} parent=39 // pred_region
          %221 = dma.done [#allocation6], 256
        $region44: #{tpu_custom_call.1} parent=39 // pred_fallthru
          _
        // Predicated region
        $region45: #{tpu_custom_call.1} parent=39 // pred_check
          %p222 = pneg %p105
        $region46: #{tpu_custom_call.1} parent=39 // pred_check_branch
          %224 = sbr.rel (%p222) target = $region48
        $region47: #{tpu_custom_call.1} parent=39 // pred_region
          %225 = dma.done [#allocation9], 256
        $region48: #{tpu_custom_call.1} parent=39 // pred_fallthru
          _
        %p226 = scmp.lt.s32.totalorder %s21, 1
        %s227 = scalar_select %p226, %s21, 1
        %s228 = smul.addr %s227, 4
        %s229 = smul.addr %s228, 4
        %s230 = scalar_lea.vmem %s0, %s229
        %p231 = pneg %p42
        %p232 = pneg %p39
        %p233 = pneg %p63
        %p234 = pneg %p60
        %p235 = pneg %p84
        %p236 = pneg %p81
        %p237 = pneg %p105
        %p238 = pneg %p102
        %p239 = pneg %p126
        %p240 = pneg %p123
        %p241 = pneg %p152
        %p242 = pneg %p149
        %s243 = sand.u32 %s139, 1
        %s244 = scalar_lea.sflag [#allocation7], %s243
        %s245 = sand.u32 %s139, 1
        %s246 = smul.addr %s245, 32
        %s247 = scalar_lea.vmem [#allocation10], %s246
        %p248 = scmp.lt.s32.totalorder %s21, 1
        %s249 = scalar_select %p248, %s21, 1
        %s250 = smul.addr %s249, 4
        %s251 = smul.addr %s250, 4
        %s252 = scalar_lea.vmem %s0, %s251
        %256 = vst [vmem:[#allocation2] sm:$0xf] 0
        %257 = vst [vmem:[#allocation2 + $0x10] sm:$0xf] 0
        %258 = vst [vmem:[#allocation2 + $0xc] sm:$0xf] 0
        %259 = vst [vmem:[#allocation2 + $0x1c] sm:$0xf] 0
        %260 = vst [vmem:[#allocation3] sm:$0xf] 0
        %261 = vst [vmem:[#allocation3 + $0x10] sm:$0xf] 0
        %262 = vst [vmem:[#allocation3 + $0xc] sm:$0xf] 0
        %263 = vst [vmem:[#allocation3 + $0x1c] sm:$0xf] 0
        %v264 = vld [vmem:[%s252] sm:$0xff]
        %v265 = vld [vmem:[%s252 + $0x8] sm:$0xff]
        %266 = vst [vmem:[#allocation2 + $0x4] sm:$0xff] %v264
        %267 = vst [vmem:[#allocation2 + $0x14] sm:$0xff] %v265
        %v268 = vlaneseq
        %v269 = vand.u32 %v268, 127
        %v270 = vadd.s32 %v269, 128
        %vm271 = vcmp.lt.s32.totalorder %v269, 0
        %v272 = vsub.s32 0, %v269
        %v273 = vsel %vm271, %v272, %v269
        %v274 = vshrl.u32 %v273, 4
        %v275 = vand.u32 %v273, 15
        %v276 = vsub.s32 0, %v275
        %v277 = vsel %vm271, %v276, %v275
        %vm278 = vcmp.lt.s32.totalorder %v270, 0
        %v279 = vsub.s32 0, %v270
        %v280 = vsel %vm278, %v279, %v270
        %v281 = vshrl.u32 %v280, 4
        %v282 = vand.u32 %v280, 15
        %v283 = vsub.s32 0, %v282
        %v284 = vsel %vm278, %v283, %v282
        %vm285 = vcmp.ne.s32.totalorder %v277, 0
        %vm286 = vcmp.ne.s32.totalorder %v284, 0
        %vm287 = vcmp.lt.s32.totalorder %v277, 0
        %vm288 = vcmp.lt.s32.totalorder %v284, 0
        %vm289 = vmand %vm287, %vm285
        %vm290 = vmand %vm288, %vm286
        %v291 = vadd.s32 %v277, 16
        %v292 = vadd.s32 %v284, 16
        %v293 = vsel %vm289, %v291, %v277
        %v294 = vsel %vm290, %v292, %v284
        %vm295 = vcmp.gt.s32.totalorder %v293, 0
        %vm296 = vcmp.gt.s32.totalorder %v294, 0
        %vm297 = vcmp.lt.s32.totalorder %v293, 15
        %vm298 = vcmp.lt.s32.totalorder %v294, 15
        %v299 = vld [vmem:[#allocation5] sm:$0xff]
        %v300 = vld [vmem:[#allocation5 + $0x8] sm:$0xff]
        %v301 = vld [vmem:[%s2] sm:$0xff]
        %v302 = vld [vmem:[%s2 + $0x8] sm:$0xff]
        %v303 = vld [vmem:[#allocation2] sm:$0xff]
        %v304 = vld [vmem:[#allocation2 + $0x8] sm:$0xf]
        %v305 = vld [vmem:[#allocation2 + $0x10] sm:$0xff]
        %v306 = vld [vmem:[#allocation2 + $0x18] sm:$0xf]
        %v307 = vsel %vm295, 1, 0
        %v308 = vsel %vm296, 1, 0
        %vm309 = vcmp.eq.s32.totalorder %v307, 1
        %vm310 = vcmp.eq.s32.totalorder %v308, 1
        %vm311 = vmpackc.low %vm310, %vm309
        %v312 = vsel %vm311, 65537, 0
        %313 = vrot.lane.b32.xlu0 %v312, 111
        %v314 = vpop.permute.xlu0 %313
        %v315 = vrot.slane %v314, 4
        %vm316 = vcmask 908288
        %v317 = vsel %vm316, %v315, %v314
        %vm318 = vcmp.ne.s16.totalorder %v317, 0
        %vm319 = vcmp.ne.s16.totalorder %v315, 0
        %v320 = vsel %vm318, %v303, 0
        %v321 = vsel %vm319, %v304, 0
        %v322 = vsel %vm318, %v305, 0
        %v323 = vsel %vm319, %v306, 0
        %328 = vrot.lane.b32.xlu0 %v320, 17
        %v329 = vpop.permute.xlu0 %328
        %330 = vrot.lane.b32.xlu0 %v321, 17
        %v331 = vpop.permute.xlu0 %330
        %332 = vrot.lane.b32.xlu0 %v322, 17
        %v333 = vpop.permute.xlu0 %332
        %334 = vrot.lane.b32.xlu0 %v323, 17
        %v335 = vpop.permute.xlu0 %334
        %v336 = vrot.slane %v329, 4
        %v337 = vrot.slane %v331, 4
        %v338 = vrot.slane %v333, 4
        %v339 = vrot.slane %v335, 4
        %vm340 = vcmask 1043456
        %v341 = vsel %vm340, %v336, %v337
        %vm342 = vcmask 138240
        %v343 = vsel %vm342, %v329, %v341
        %v344 = vsel %vm340, %v338, %v339
        %v345 = vsel %vm342, %v333, %v344
        %348 = vst [vmem:[#allocation4] sm:$0xff] %v343
        %349 = vst [vmem:[#allocation4 + $0x8] sm:$0xff] %v345
        %v350 = vld [vmem:[#allocation2] sm:$0xff]
        %v351 = vld [vmem:[#allocation2 + $0x8] sm:$0xf]
        %v352 = vld [vmem:[#allocation2 + $0x10] sm:$0xff]
        %v353 = vld [vmem:[#allocation2 + $0x18] sm:$0xf]
        %358 = vrot.lane.b32.xlu0 %v350, 16
        %v359 = vpop.permute.xlu0 %358
        %360 = vrot.lane.b32.xlu0 %v351, 16
        %v361 = vpop.permute.xlu0 %360
        %362 = vrot.lane.b32.xlu0 %v352, 16
        %v363 = vpop.permute.xlu0 %362
        %364 = vrot.lane.b32.xlu0 %v353, 16
        %v365 = vpop.permute.xlu0 %364
        %v366 = vrot.slane %v359, 4
        %v367 = vrot.slane %v361, 4
        %v368 = vrot.slane %v363, 4
        %v369 = vrot.slane %v365, 4
        %v370 = vsel %vm340, %v366, %v367
        %vm371 = vcmask 130048
        %v372 = vsel %vm371, %v359, %v370
        %v373 = vsel %vm340, %v368, %v369
        %v374 = vsel %vm371, %v363, %v373
        %377 = vst [vmem:[#allocation4 + $0x10] sm:$0xff] %v372
        %378 = vst [vmem:[#allocation4 + $0x18] sm:$0xff] %v374
        %v379 = vld [vmem:[#allocation2] sm:$0xff]
        %v380 = vld [vmem:[#allocation2 + $0x8] sm:$0xf]
        %v381 = vld [vmem:[#allocation2 + $0x10] sm:$0xff]
        %v382 = vld [vmem:[#allocation2 + $0x18] sm:$0xf]
        %v383 = vsel %vm297, 1, 0
        %v384 = vsel %vm298, 1, 0
        %vm385 = vcmp.eq.s32.totalorder %v383, 1
        %vm386 = vcmp.eq.s32.totalorder %v384, 1
        %vm387 = vmpackc.low %vm386, %vm385
        %v388 = vsel %vm387, 65537, 0
        %389 = vrot.lane.b32.xlu0 %v388, 113
        %v390 = vpop.permute.xlu0 %389
        %v391 = vrot.slane %v390, 4
        %vm392 = vcmask 924672
        %v393 = vsel %vm392, %v391, %v390
        %vm394 = vcmp.ne.s16.totalorder %v393, 0
        %vm395 = vcmp.ne.s16.totalorder %v391, 0
        %v396 = vsel %vm394, %v379, 0
        %v397 = vsel %vm395, %v380, 0
        %v398 = vsel %vm394, %v381, 0
        %v399 = vsel %vm395, %v382, 0
        %404 = vrot.lane.b32.xlu0 %v396, 15
        %v405 = vpop.permute.xlu0 %404
        %406 = vrot.lane.b32.xlu0 %v397, 15
        %v407 = vpop.permute.xlu0 %406
        %408 = vrot.lane.b32.xlu0 %v398, 15
        %v409 = vpop.permute.xlu0 %408
        %410 = vrot.lane.b32.xlu0 %v399, 15
        %v411 = vpop.permute.xlu0 %410
        %v412 = vrot.slane %v405, 4
        %v413 = vrot.slane %v407, 4
        %v414 = vrot.slane %v409, 4
        %v415 = vrot.slane %v411, 4
        %v416 = vsel %vm340, %v412, %v413
        %vm417 = vcmask 121856
        %v418 = vsel %vm417, %v405, %v416
        %v419 = vsel %vm340, %v414, %v415
        %v420 = vsel %vm417, %v409, %v419
        %423 = vst [vmem:[#allocation4 + $0x20] sm:$0xff] %v418
        %424 = vst [vmem:[#allocation4 + $0x28] sm:$0xff] %v420
        %v425 = vld [vmem:[#allocation2] sm:$0xff]
        %v426 = vld [vmem:[#allocation2 + $0x8] sm:$0xf]
        %v427 = vld [vmem:[#allocation2 + $0x10] sm:$0xff]
        %v428 = vld [vmem:[#allocation2 + $0x18] sm:$0xf]
        %429 = vrot.lane.b32.xlu0 %v312, 127
        %v430 = vpop.permute.xlu0 %429
        %v431 = vrot.slane %v430, 4
        %vm432 = vcmask 1039360
        %v433 = vsel %vm432, %v431, %v430
        %vm434 = vcmp.ne.s16.totalorder %v433, 0
        %vm435 = vcmp.ne.s16.totalorder %v431, 0
        %v436 = vsel %vm434, %v425, 0
        %v437 = vsel %vm435, %v426, 0
        %v438 = vsel %vm434, %v427, 0
        %v439 = vsel %vm435, %v428, 0
        %444 = vrot.lane.b32.xlu0 %v436, 1
        %v445 = vpop.permute.xlu0 %444
        %446 = vrot.lane.b32.xlu0 %v437, 1
        %v447 = vpop.permute.xlu0 %446
        %448 = vrot.lane.b32.xlu0 %v438, 1
        %v449 = vpop.permute.xlu0 %448
        %450 = vrot.lane.b32.xlu0 %v439, 1
        %v451 = vpop.permute.xlu0 %450
        %v452 = vrot.slane %v445, 4
        %v453 = vrot.slane %v447, 4
        %v454 = vrot.slane %v449, 4
        %v455 = vrot.slane %v451, 4
        %v456 = vsel %vm340, %v452, %v453
        %vm457 = vcmask 7168
        %v458 = vsel %vm457, %v445, %v456
        %v459 = vsel %vm340, %v454, %v455
        %v460 = vsel %vm457, %v449, %v459
        %463 = vst [vmem:[#allocation4 + $0x30] sm:$0xff] %v458
        %464 = vst [vmem:[#allocation4 + $0x38] sm:$0xff] %v460
        %v465 = vld [vmem:[#allocation2 + $0x4] sm:$0xff]
        %v466 = vld [vmem:[#allocation2 + $0x14] sm:$0xff]
        %467 = vst [vmem:[#allocation4 + $0x40] sm:$0xff] %v465
        %468 = vst [vmem:[#allocation4 + $0x48] sm:$0xff] %v466
        %v469 = vld [vmem:[#allocation2 + $0x4] sm:$0xff]
        %v470 = vld [vmem:[#allocation2 + $0xc] sm:$0xf]
        %v471 = vld [vmem:[#allocation2 + $0x14] sm:$0xff]
        %v472 = vld [vmem:[#allocation2 + $0x1c] sm:$0xf]
        %473 = vrot.lane.b32.xlu0 %v388, 1
        %v474 = vpop.permute.xlu0 %473
        %v475 = vrot.slane %v474, 4
        %v476 = vsel %vm457, %v475, %v474
        %vm477 = vcmp.ne.s16.totalorder %v476, 0
        %vm478 = vcmp.ne.s16.totalorder %v475, 0
        %v479 = vsel %vm477, %v469, 0
        %v480 = vsel %vm478, %v470, 0
        %v481 = vsel %vm477, %v471, 0
        %v482 = vsel %vm478, %v472, 0
        %487 = vrot.lane.b32.xlu0 %v479, 127
        %v488 = vpop.permute.xlu0 %487
        %489 = vrot.lane.b32.xlu0 %v480, 127
        %v490 = vpop.permute.xlu0 %489
        %491 = vrot.lane.b32.xlu0 %v481, 127
        %v492 = vpop.permute.xlu0 %491
        %493 = vrot.lane.b32.xlu0 %v482, 127
        %v494 = vpop.permute.xlu0 %493
        %v495 = vrot.slane %v488, 4
        %v496 = vrot.slane %v490, 4
        %v497 = vrot.slane %v492, 4
        %v498 = vrot.slane %v494, 4
        %v499 = vsel %vm340, %v495, %v496
        %v500 = vsel %vm432, %v488, %v499
        %v501 = vsel %vm340, %v497, %v498
        %v502 = vsel %vm432, %v492, %v501
        %505 = vst [vmem:[#allocation4 + $0x50] sm:$0xff] %v500
        %506 = vst [vmem:[#allocation4 + $0x58] sm:$0xff] %v502
        %v507 = vld [vmem:[#allocation2 + $0x4] sm:$0xff]
        %v508 = vld [vmem:[#allocation2 + $0xc] sm:$0xf]
        %v509 = vld [vmem:[#allocation2 + $0x14] sm:$0xff]
        %v510 = vld [vmem:[#allocation2 + $0x1c] sm:$0xf]
        %511 = vrot.lane.b32.xlu0 %v312, 15
        %v512 = vpop.permute.xlu0 %511
        %v513 = vrot.slane %v512, 4
        %v514 = vsel %vm417, %v513, %v512
        %vm515 = vcmp.ne.s16.totalorder %v514, 0
        %vm516 = vcmp.ne.s16.totalorder %v513, 0
        %v517 = vsel %vm515, %v507, 0
        %v518 = vsel %vm516, %v508, 0
        %v519 = vsel %vm515, %v509, 0
        %v520 = vsel %vm516, %v510, 0
        %525 = vrot.lane.b32.xlu0 %v517, 113
        %v526 = vpop.permute.xlu0 %525
        %527 = vrot.lane.b32.xlu0 %v518, 113
        %v528 = vpop.permute.xlu0 %527
        %529 = vrot.lane.b32.xlu0 %v519, 113
        %v530 = vpop.permute.xlu0 %529
        %531 = vrot.lane.b32.xlu0 %v520, 113
        %v532 = vpop.permute.xlu0 %531
        %v533 = vrot.slane %v526, 4
        %v534 = vrot.slane %v528, 4
        %v535 = vrot.slane %v530, 4
        %v536 = vrot.slane %v532, 4
        %v537 = vsel %vm340, %v533, %v534
        %v538 = vsel %vm392, %v526, %v537
        %v539 = vsel %vm340, %v535, %v536
        %v540 = vsel %vm392, %v530, %v539
        %543 = vst [vmem:[#allocation4 + $0x60] sm:$0xff] %v538
        %544 = vst [vmem:[#allocation4 + $0x68] sm:$0xff] %v540
        %v545 = vld [vmem:[#allocation2 + $0x4] sm:$0xff]
        %v546 = vld [vmem:[#allocation2 + $0xc] sm:$0xf]
        %v547 = vld [vmem:[#allocation2 + $0x14] sm:$0xff]
        %v548 = vld [vmem:[#allocation2 + $0x1c] sm:$0xf]
        %553 = vrot.lane.b32.xlu0 %v545, 112
        %v554 = vpop.permute.xlu0 %553
        %555 = vrot.lane.b32.xlu0 %v546, 112
        %v556 = vpop.permute.xlu0 %555
        %557 = vrot.lane.b32.xlu0 %v547, 112
        %v558 = vpop.permute.xlu0 %557
        %559 = vrot.lane.b32.xlu0 %v548, 112
        %v560 = vpop.permute.xlu0 %559
        %v561 = vrot.slane %v554, 4
        %v562 = vrot.slane %v556, 4
        %v563 = vrot.slane %v558, 4
        %v564 = vrot.slane %v560, 4
        %v565 = vsel %vm340, %v561, %v562
        %vm566 = vcmask 916480
        %v567 = vsel %vm566, %v554, %v565
        %v568 = vsel %vm340, %v563, %v564
        %v569 = vsel %vm566, %v558, %v568
        %572 = vst [vmem:[#allocation4 + $0x70] sm:$0xff] %v567
        %573 = vst [vmem:[#allocation4 + $0x78] sm:$0xff] %v569
        %v574 = vld [vmem:[#allocation2 + $0x4] sm:$0xff]
        %v575 = vld [vmem:[#allocation2 + $0xc] sm:$0xf]
        %v576 = vld [vmem:[#allocation2 + $0x14] sm:$0xff]
        %v577 = vld [vmem:[#allocation2 + $0x1c] sm:$0xf]
        %578 = vrot.lane.b32.xlu0 %v388, 17
        %v579 = vpop.permute.xlu0 %578
        %v580 = vrot.slane %v579, 4
        %v581 = vsel %vm342, %v580, %v579
        %vm582 = vcmp.ne.s16.totalorder %v581, 0
        %vm583 = vcmp.ne.s16.totalorder %v580, 0
        %v584 = vsel %vm582, %v574, 0
        %v585 = vsel %vm583, %v575, 0
        %v586 = vsel %vm582, %v576, 0
        %v587 = vsel %vm583, %v577, 0
        %592 = vrot.lane.b32.xlu0 %v584, 111
        %v593 = vpop.permute.xlu0 %592
        %594 = vrot.lane.b32.xlu0 %v585, 111
        %v595 = vpop.permute.xlu0 %594
        %596 = vrot.lane.b32.xlu0 %v586, 111
        %v597 = vpop.permute.xlu0 %596
        %598 = vrot.lane.b32.xlu0 %v587, 111
        %v599 = vpop.permute.xlu0 %598
        %v600 = vrot.slane %v593, 4
        %v601 = vrot.slane %v595, 4
        %v602 = vrot.slane %v597, 4
        %v603 = vrot.slane %v599, 4
        %v604 = vsel %vm340, %v600, %v601
        %v605 = vsel %vm316, %v593, %v604
        %v606 = vsel %vm340, %v602, %v603
        %v607 = vsel %vm316, %v597, %v606
        %610 = vst [vmem:[#allocation4 + $0x80] sm:$0xff] %v605
        %611 = vst [vmem:[#allocation4 + $0x88] sm:$0xff] %v607
        %v612 = vld [vmem:[#allocation4] sm:$0xff]
        %v613 = vld [vmem:[#allocation4 + $0x8] sm:$0xff]
        %v614 = vld [vmem:[#allocation4 + $0x10] sm:$0xff]
        %v615 = vld [vmem:[#allocation4 + $0x18] sm:$0xff]
        %v616 = vld [vmem:[#allocation4 + $0x20] sm:$0xff]
        %v617 = vld [vmem:[#allocation4 + $0x28] sm:$0xff]
        %v618 = vld [vmem:[#allocation4 + $0x30] sm:$0xff]
        %v619 = vld [vmem:[#allocation4 + $0x38] sm:$0xff]
        %v620 = vld [vmem:[#allocation4 + $0x40] sm:$0xff]
        %v621 = vld [vmem:[#allocation4 + $0x48] sm:$0xff]
        %v622 = vld [vmem:[#allocation4 + $0x50] sm:$0xff]
        %v623 = vld [vmem:[#allocation4 + $0x58] sm:$0xff]
        %v624 = vld [vmem:[#allocation4 + $0x60] sm:$0xff]
        %v625 = vld [vmem:[#allocation4 + $0x68] sm:$0xff]
        %v626 = vld [vmem:[#allocation4 + $0x70] sm:$0xff]
        %v627 = vld [vmem:[#allocation4 + $0x78] sm:$0xff]
        %v628 = vld [vmem:[#allocation4 + $0x80] sm:$0xff]
        %v629 = vld [vmem:[#allocation4 + $0x88] sm:$0xff]
        %631 = vset.pattern.permute.xlu0 0
        %632 = vperm.xlu0 %631, %v301
        %v633 = vpop.permute.xlu0 %632
        %636 = vset.pattern.permute.xlu0 0
        %637 = vperm.xlu0 %636, %v302
        %v638 = vpop.permute.xlu0 %637
        %v642 = vunpack.c.l.b16 %v299
        %v643 = vunpack.c.h.b16 %v299
        %v644 = vunpack.c.l.b16 %v300
        %v645 = vunpack.c.h.b16 %v300
        %v646 = vpack.c.b16 %v644, %v642
        %v647 = vpack.c.b16 %v645, %v643
        %v667 = vunpack.c.l.b16 %v612
        %v668 = vunpack.c.h.b16 %v612
        %v669 = vunpack.c.l.b16 %v613
        %v670 = vunpack.c.h.b16 %v613
        %v671 = vunpack.c.l.b16 %v614
        %v672 = vunpack.c.h.b16 %v614
        %v673 = vunpack.c.l.b16 %v615
        %v674 = vunpack.c.h.b16 %v615
        %v675 = vunpack.c.l.b16 %v616
        %v676 = vunpack.c.h.b16 %v616
        %v677 = vunpack.c.l.b16 %v617
        %v678 = vunpack.c.h.b16 %v617
        %v679 = vunpack.c.l.b16 %v618
        %v680 = vunpack.c.h.b16 %v618
        %v681 = vunpack.c.l.b16 %v619
        %v682 = vunpack.c.h.b16 %v619
        %v683 = vunpack.c.l.b16 %v620
        %v684 = vunpack.c.h.b16 %v620
        %v685 = vunpack.c.l.b16 %v621
        %v686 = vunpack.c.h.b16 %v621
        %v687 = vunpack.c.l.b16 %v622
        %v688 = vunpack.c.h.b16 %v622
        %v689 = vunpack.c.l.b16 %v623
        %v690 = vunpack.c.h.b16 %v623
        %v691 = vunpack.c.l.b16 %v624
        %v692 = vunpack.c.h.b16 %v624
        %v693 = vunpack.c.l.b16 %v625
        %v694 = vunpack.c.h.b16 %v625
        %v695 = vunpack.c.l.b16 %v626
        %v696 = vunpack.c.h.b16 %v626
        %v697 = vunpack.c.l.b16 %v627
        %v698 = vunpack.c.h.b16 %v627
        %v699 = vunpack.c.l.b16 %v628
        %v700 = vunpack.c.h.b16 %v628
        %v701 = vunpack.c.l.b16 %v629
        %v702 = vunpack.c.h.b16 %v629
        %v703 = vpack.c.b16 %v669, %v667
        %v704 = vpack.c.b16 %v670, %v668
        %v705 = vpack.c.b16 %v673, %v671
        %v706 = vpack.c.b16 %v674, %v672
        %v707 = vpack.c.b16 %v677, %v675
        %v708 = vpack.c.b16 %v678, %v676
        %v709 = vpack.c.b16 %v681, %v679
        %v710 = vpack.c.b16 %v682, %v680
        %v711 = vpack.c.b16 %v685, %v683
        %v712 = vpack.c.b16 %v686, %v684
        %v713 = vpack.c.b16 %v689, %v687
        %v714 = vpack.c.b16 %v690, %v688
        %v715 = vpack.c.b16 %v693, %v691
        %v716 = vpack.c.b16 %v694, %v692
        %v717 = vpack.c.b16 %v697, %v695
        %v718 = vpack.c.b16 %v698, %v696
        %v719 = vpack.c.b16 %v701, %v699
        %v720 = vpack.c.b16 %v702, %v700
        %vm739 = vcmask 130048
        %v741 = vsel %vm739, %v647, 0
        %743 = vmatprep.subr.bf16.mxu0 %v718
        %744 = vmatpush1.bf16.msra.mxu0 %v717
        %745 = vmatprep.subr.bf16.mxu0 %v716
        %746 = vmatpush1.bf16.msra.mxu0 %v715
        %747 = vmatprep.subr.bf16.mxu0 %v714
        %748 = vmatpush1.bf16.msra.mxu0 %v713
        %749 = vmatprep.subr.bf16.mxu0 %v712
        %750 = vmatpush1.bf16.msra.mxu0 %v711
        %751 = vmatprep.subr.bf16.mxu0 %v710
        %752 = vmatpush1.bf16.msra.mxu0 %v709
        %753 = vmatprep.subr.bf16.mxu0 %v708
        %754 = vmatpush1.bf16.msra.mxu0 %v707
        %755 = vmatprep.subr.bf16.mxu0 %v706
        %756 = vmatpush1.bf16.msra.mxu0 %v705
        %757 = vmatprep.subr.bf16.mxu0 %v704
        %758 = vmatpush1.bf16.msra.mxu0 %v703
        %759 = vmatprep.subr.bf16.mxu0 0
        %760 = vmatpush2.bf16.msra.mxu0 0
        %761 = vmatprep.subr.bf16.mxu0 0
        %762 = vmatpush2.bf16.msra.mxu0 0
        %763 = vmatprep.subr.bf16.mxu0 0
        %764 = vmatpush2.bf16.msra.mxu0 0
        %765 = vmatprep.subr.bf16.mxu0 0
        %766 = vmatpush2.bf16.msra.mxu0 0
        %767 = vmatprep.subr.bf16.mxu0 0
        %768 = vmatpush2.bf16.msra.mxu0 0
        %769 = vmatprep.subr.bf16.mxu0 0
        %770 = vmatpush2.bf16.msra.mxu0 0
        %771 = vmatprep.subr.bf16.mxu0 0
        %772 = vmatpush2.bf16.msra.mxu0 0
        %773 = vmatprep.subr.bf16.mxu0 %v720
        %774 = vmatpush2.bf16.msra.mxu0 %v719
        %775 = vmatprep.mubr.bf16.mxu0 %v741
        %776 = vmatmul.mubr.bf16.gmra.mxu0 %v646
        %v777 = vpop.f32.mrf.mxu0
        %v778 = vadd.f32 %v633, %v777
        %v779 = vpop.f32.mrf.mxu0
        %v780 = vadd.f32 %v633, %v779
        %v781 = vpop.f32.mrf.mxu0
        %v782 = vadd.f32 %v638, %v781
        %v783 = vpop.f32.mrf.mxu0
        %v784 = vadd.f32 %v638, %v783
        %785 = vdwg.mxu0
        %v786 = vmax.f32 %v778, 0.0
        %v787 = vmax.f32 %v780, 0.0
        %v788 = vmax.f32 %v782, 0.0
        %v789 = vmax.f32 %v784, 0.0
        %v790 = vpack.c.bf16 %v788, %v786
        %v791 = vpack.c.bf16 %v789, %v787
        %v794 = vunpack.c.l.b16 %v790
        %v795 = vunpack.c.l.b16 %v791
        %v796 = vunpack.c.h.b16 %v790
        %v797 = vunpack.c.h.b16 %v791
        %v798 = vpack.c.b16 %v795, %v794
        %v799 = vpack.c.b16 %v797, %v796
        %802 = vst [vmem:[#allocation3 + $0x4] sm:$0xff] %v798
        %803 = vst [vmem:[#allocation3 + $0x14] sm:$0xff] %v799
        %v804 = vld [vmem:[#allocation8] sm:$0xff]
        %v805 = vld [vmem:[#allocation8 + $0x8] sm:$0xff]
        %v806 = vld [vmem:[%s4] sm:$0xff]
        %v807 = vld [vmem:[%s4 + $0x8] sm:$0xff]
        %v808 = vld [vmem:[#allocation3] sm:$0xff]
        %v809 = vld [vmem:[#allocation3 + $0x8] sm:$0xf]
        %v810 = vld [vmem:[#allocation3 + $0x10] sm:$0xff]
        %v811 = vld [vmem:[#allocation3 + $0x18] sm:$0xf]
        %v812 = vsel %vm318, %v808, 0
        %v813 = vsel %vm319, %v809, 0
        %v814 = vsel %vm318, %v810, 0
        %v815 = vsel %vm319, %v811, 0
        %820 = vrot.lane.b32.xlu0 %v812, 17
        %v821 = vpop.permute.xlu0 %820
        %822 = vrot.lane.b32.xlu0 %v813, 17
        %v823 = vpop.permute.xlu0 %822
        %824 = vrot.lane.b32.xlu0 %v814, 17
        %v825 = vpop.permute.xlu0 %824
        %826 = vrot.lane.b32.xlu0 %v815, 17
        %v827 = vpop.permute.xlu0 %826
        %v828 = vrot.slane %v821, 4
        %v829 = vrot.slane %v823, 4
        %v830 = vrot.slane %v825, 4
        %v831 = vrot.slane %v827, 4
        %v832 = vsel %vm340, %v828, %v829
        %v833 = vsel %vm342, %v821, %v832
        %v834 = vsel %vm340, %v830, %v831
        %v835 = vsel %vm342, %v825, %v834
        %838 = vst [vmem:[#allocation4] sm:$0xff] %v833
        %839 = vst [vmem:[#allocation4 + $0x8] sm:$0xff] %v835
        %v840 = vld [vmem:[#allocation3] sm:$0xff]
        %v841 = vld [vmem:[#allocation3 + $0x8] sm:$0xf]
        %v842 = vld [vmem:[#allocation3 + $0x10] sm:$0xff]
        %v843 = vld [vmem:[#allocation3 + $0x18] sm:$0xf]
        %848 = vrot.lane.b32.xlu0 %v840, 16
        %v849 = vpop.permute.xlu0 %848
        %850 = vrot.lane.b32.xlu0 %v841, 16
        %v851 = vpop.permute.xlu0 %850
        %852 = vrot.lane.b32.xlu0 %v842, 16
        %v853 = vpop.permute.xlu0 %852
        %854 = vrot.lane.b32.xlu0 %v843, 16
        %v855 = vpop.permute.xlu0 %854
        %v856 = vrot.slane %v849, 4
        %v857 = vrot.slane %v851, 4
        %v858 = vrot.slane %v853, 4
        %v859 = vrot.slane %v855, 4
        %v860 = vsel %vm340, %v856, %v857
        %v861 = vsel %vm371, %v849, %v860
        %v862 = vsel %vm340, %v858, %v859
        %v863 = vsel %vm371, %v853, %v862
        %866 = vst [vmem:[#allocation4 + $0x10] sm:$0xff] %v861
        %867 = vst [vmem:[#allocation4 + $0x18] sm:$0xff] %v863
        %v868 = vld [vmem:[#allocation3] sm:$0xff]
        %v869 = vld [vmem:[#allocation3 + $0x8] sm:$0xf]
        %v870 = vld [vmem:[#allocation3 + $0x10] sm:$0xff]
        %v871 = vld [vmem:[#allocation3 + $0x18] sm:$0xf]
        %v872 = vsel %vm394, %v868, 0
        %v873 = vsel %vm395, %v869, 0
        %v874 = vsel %vm394, %v870, 0
        %v875 = vsel %vm395, %v871, 0
        %880 = vrot.lane.b32.xlu0 %v872, 15
        %v881 = vpop.permute.xlu0 %880
        %882 = vrot.lane.b32.xlu0 %v873, 15
        %v883 = vpop.permute.xlu0 %882
        %884 = vrot.lane.b32.xlu0 %v874, 15
        %v885 = vpop.permute.xlu0 %884
        %886 = vrot.lane.b32.xlu0 %v875, 15
        %v887 = vpop.permute.xlu0 %886
        %v888 = vrot.slane %v881, 4
        %v889 = vrot.slane %v883, 4
        %v890 = vrot.slane %v885, 4
        %v891 = vrot.slane %v887, 4
        %v892 = vsel %vm340, %v888, %v889
        %v893 = vsel %vm417, %v881, %v892
        %v894 = vsel %vm340, %v890, %v891
        %v895 = vsel %vm417, %v885, %v894
        %898 = vst [vmem:[#allocation4 + $0x20] sm:$0xff] %v893
        %899 = vst [vmem:[#allocation4 + $0x28] sm:$0xff] %v895
        %v900 = vld [vmem:[#allocation3] sm:$0xff]
        %v901 = vld [vmem:[#allocation3 + $0x8] sm:$0xf]
        %v902 = vld [vmem:[#allocation3 + $0x10] sm:$0xff]
        %v903 = vld [vmem:[#allocation3 + $0x18] sm:$0xf]
        %v904 = vsel %vm434, %v900, 0
        %v905 = vsel %vm435, %v901, 0
        %v906 = vsel %vm434, %v902, 0
        %v907 = vsel %vm435, %v903, 0
        %912 = vrot.lane.b32.xlu0 %v904, 1
        %v913 = vpop.permute.xlu0 %912
        %914 = vrot.lane.b32.xlu0 %v905, 1
        %v915 = vpop.permute.xlu0 %914
        %916 = vrot.lane.b32.xlu0 %v906, 1
        %v917 = vpop.permute.xlu0 %916
        %918 = vrot.lane.b32.xlu0 %v907, 1
        %v919 = vpop.permute.xlu0 %918
        %v920 = vrot.slane %v913, 4
        %v921 = vrot.slane %v915, 4
        %v922 = vrot.slane %v917, 4
        %v923 = vrot.slane %v919, 4
        %v924 = vsel %vm340, %v920, %v921
        %v925 = vsel %vm457, %v913, %v924
        %v926 = vsel %vm340, %v922, %v923
        %v927 = vsel %vm457, %v917, %v926
        %930 = vst [vmem:[#allocation4 + $0x30] sm:$0xff] %v925
        %931 = vst [vmem:[#allocation4 + $0x38] sm:$0xff] %v927
        %v932 = vld [vmem:[#allocation3 + $0x4] sm:$0xff]
        %v933 = vld [vmem:[#allocation3 + $0x14] sm:$0xff]
        %934 = vst [vmem:[#allocation4 + $0x40] sm:$0xff] %v932
        %935 = vst [vmem:[#allocation4 + $0x48] sm:$0xff] %v933
        %v936 = vld [vmem:[#allocation3 + $0x4] sm:$0xff]
        %v937 = vld [vmem:[#allocation3 + $0xc] sm:$0xf]
        %v938 = vld [vmem:[#allocation3 + $0x14] sm:$0xff]
        %v939 = vld [vmem:[#allocation3 + $0x1c] sm:$0xf]
        %v940 = vsel %vm477, %v936, 0
        %v941 = vsel %vm478, %v937, 0
        %v942 = vsel %vm477, %v938, 0
        %v943 = vsel %vm478, %v939, 0
        %948 = vrot.lane.b32.xlu0 %v940, 127
        %v949 = vpop.permute.xlu0 %948
        %950 = vrot.lane.b32.xlu0 %v941, 127
        %v951 = vpop.permute.xlu0 %950
        %952 = vrot.lane.b32.xlu0 %v942, 127
        %v953 = vpop.permute.xlu0 %952
        %954 = vrot.lane.b32.xlu0 %v943, 127
        %v955 = vpop.permute.xlu0 %954
        %v956 = vrot.slane %v949, 4
        %v957 = vrot.slane %v951, 4
        %v958 = vrot.slane %v953, 4
        %v959 = vrot.slane %v955, 4
        %v960 = vsel %vm340, %v956, %v957
        %v961 = vsel %vm432, %v949, %v960
        %v962 = vsel %vm340, %v958, %v959
        %v963 = vsel %vm432, %v953, %v962
        %966 = vst [vmem:[#allocation4 + $0x50] sm:$0xff] %v961
        %967 = vst [vmem:[#allocation4 + $0x58] sm:$0xff] %v963
        %v968 = vld [vmem:[#allocation3 + $0x4] sm:$0xff]
        %v969 = vld [vmem:[#allocation3 + $0xc] sm:$0xf]
        %v970 = vld [vmem:[#allocation3 + $0x14] sm:$0xff]
        %v971 = vld [vmem:[#allocation3 + $0x1c] sm:$0xf]
        %v972 = vsel %vm515, %v968, 0
        %v973 = vsel %vm516, %v969, 0
        %v974 = vsel %vm515, %v970, 0
        %v975 = vsel %vm516, %v971, 0
        %980 = vrot.lane.b32.xlu0 %v972, 113
        %v981 = vpop.permute.xlu0 %980
        %982 = vrot.lane.b32.xlu0 %v973, 113
        %v983 = vpop.permute.xlu0 %982
        %984 = vrot.lane.b32.xlu0 %v974, 113
        %v985 = vpop.permute.xlu0 %984
        %986 = vrot.lane.b32.xlu0 %v975, 113
        %v987 = vpop.permute.xlu0 %986
        %v988 = vrot.slane %v981, 4
        %v989 = vrot.slane %v983, 4
        %v990 = vrot.slane %v985, 4
        %v991 = vrot.slane %v987, 4
        %v992 = vsel %vm340, %v988, %v989
        %v993 = vsel %vm392, %v981, %v992
        %v994 = vsel %vm340, %v990, %v991
        %v995 = vsel %vm392, %v985, %v994
        %998 = vst [vmem:[#allocation4 + $0x60] sm:$0xff] %v993
        %999 = vst [vmem:[#allocation4 + $0x68] sm:$0xff] %v995
        %v1000 = vld [vmem:[#allocation3 + $0x4] sm:$0xff]
        %v1001 = vld [vmem:[#allocation3 + $0xc] sm:$0xf]
        %v1002 = vld [vmem:[#allocation3 + $0x14] sm:$0xff]
        %v1003 = vld [vmem:[#allocation3 + $0x1c] sm:$0xf]
        %1008 = vrot.lane.b32.xlu0 %v1000, 112
        %v1009 = vpop.permute.xlu0 %1008
        %1010 = vrot.lane.b32.xlu0 %v1001, 112
        %v1011 = vpop.permute.xlu0 %1010
        %1012 = vrot.lane.b32.xlu0 %v1002, 112
        %v1013 = vpop.permute.xlu0 %1012
        %1014 = vrot.lane.b32.xlu0 %v1003, 112
        %v1015 = vpop.permute.xlu0 %1014
        %v1016 = vrot.slane %v1009, 4
        %v1017 = vrot.slane %v1011, 4
        %v1018 = vrot.slane %v1013, 4
        %v1019 = vrot.slane %v1015, 4
        %v1020 = vsel %vm340, %v1016, %v1017
        %v1021 = vsel %vm566, %v1009, %v1020
        %v1022 = vsel %vm340, %v1018, %v1019
        %v1023 = vsel %vm566, %v1013, %v1022
        %1026 = vst [vmem:[#allocation4 + $0x70] sm:$0xff] %v1021
        %1027 = vst [vmem:[#allocation4 + $0x78] sm:$0xff] %v1023
        %v1028 = vld [vmem:[#allocation3 + $0x4] sm:$0xff]
        %v1029 = vld [vmem:[#allocation3 + $0xc] sm:$0xf]
        %v1030 = vld [vmem:[#allocation3 + $0x14] sm:$0xff]
        %v1031 = vld [vmem:[#allocation3 + $0x1c] sm:$0xf]
        %v1032 = vsel %vm582, %v1028, 0
        %v1033 = vsel %vm583, %v1029, 0
        %v1034 = vsel %vm582, %v1030, 0
        %v1035 = vsel %vm583, %v1031, 0
        %1040 = vrot.lane.b32.xlu0 %v1032, 111
        %v1041 = vpop.permute.xlu0 %1040
        %1042 = vrot.lane.b32.xlu0 %v1033, 111
        %v1043 = vpop.permute.xlu0 %1042
        %1044 = vrot.lane.b32.xlu0 %v1034, 111
        %v1045 = vpop.permute.xlu0 %1044
        %1046 = vrot.lane.b32.xlu0 %v1035, 111
        %v1047 = vpop.permute.xlu0 %1046
        %v1048 = vrot.slane %v1041, 4
        %v1049 = vrot.slane %v1043, 4
        %v1050 = vrot.slane %v1045, 4
        %v1051 = vrot.slane %v1047, 4
        %v1052 = vsel %vm340, %v1048, %v1049
        %v1053 = vsel %vm316, %v1041, %v1052
        %v1054 = vsel %vm340, %v1050, %v1051
        %v1055 = vsel %vm316, %v1045, %v1054
        %1058 = vst [vmem:[#allocation4 + $0x80] sm:$0xff] %v1053
        %1059 = vst [vmem:[#allocation4 + $0x88] sm:$0xff] %v1055
        %v1060 = vld [vmem:[#allocation4] sm:$0xff]
        %v1061 = vld [vmem:[#allocation4 + $0x8] sm:$0xff]
        %v1062 = vld [vmem:[#allocation4 + $0x10] sm:$0xff]
        %v1063 = vld [vmem:[#allocation4 + $0x18] sm:$0xff]
        %v1064 = vld [vmem:[#allocation4 + $0x20] sm:$0xff]
        %v1065 = vld [vmem:[#allocation4 + $0x28] sm:$0xff]
        %v1066 = vld [vmem:[#allocation4 + $0x30] sm:$0xff]
        %v1067 = vld [vmem:[#allocation4 + $0x38] sm:$0xff]
        %v1068 = vld [vmem:[#allocation4 + $0x40] sm:$0xff]
        %v1069 = vld [vmem:[#allocation4 + $0x48] sm:$0xff]
        %v1070 = vld [vmem:[#allocation4 + $0x50] sm:$0xff]
        %v1071 = vld [vmem:[#allocation4 + $0x58] sm:$0xff]
        %v1072 = vld [vmem:[#allocation4 + $0x60] sm:$0xff]
        %v1073 = vld [vmem:[#allocation4 + $0x68] sm:$0xff]
        %v1074 = vld [vmem:[#allocation4 + $0x70] sm:$0xff]
        %v1075 = vld [vmem:[#allocation4 + $0x78] sm:$0xff]
        %v1076 = vld [vmem:[#allocation4 + $0x80] sm:$0xff]
        %v1077 = vld [vmem:[#allocation4 + $0x88] sm:$0xff]
        %1079 = vset.pattern.permute.xlu0 0
        %1080 = vperm.xlu0 %1079, %v806
        %v1081 = vpop.permute.xlu0 %1080
        %1084 = vset.pattern.permute.xlu0 0
        %1085 = vperm.xlu0 %1084, %v807
        %v1086 = vpop.permute.xlu0 %1085
        %v1090 = vunpack.c.l.b16 %v804
        %v1091 = vunpack.c.h.b16 %v804
        %v1092 = vunpack.c.l.b16 %v805
        %v1093 = vunpack.c.h.b16 %v805
        %v1094 = vpack.c.b16 %v1092, %v1090
        %v1095 = vpack.c.b16 %v1093, %v1091
        %v1115 = vunpack.c.l.b16 %v1060
        %v1116 = vunpack.c.h.b16 %v1060
        %v1117 = vunpack.c.l.b16 %v1061
        %v1118 = vunpack.c.h.b16 %v1061
        %v1119 = vunpack.c.l.b16 %v1062
        %v1120 = vunpack.c.h.b16 %v1062
        %v1121 = vunpack.c.l.b16 %v1063
        %v1122 = vunpack.c.h.b16 %v1063
        %v1123 = vunpack.c.l.b16 %v1064
        %v1124 = vunpack.c.h.b16 %v1064
        %v1125 = vunpack.c.l.b16 %v1065
        %v1126 = vunpack.c.h.b16 %v1065
        %v1127 = vunpack.c.l.b16 %v1066
        %v1128 = vunpack.c.h.b16 %v1066
        %v1129 = vunpack.c.l.b16 %v1067
        %v1130 = vunpack.c.h.b16 %v1067
        %v1131 = vunpack.c.l.b16 %v1068
        %v1132 = vunpack.c.h.b16 %v1068
        %v1133 = vunpack.c.l.b16 %v1069
        %v1134 = vunpack.c.h.b16 %v1069
        %v1135 = vunpack.c.l.b16 %v1070
        %v1136 = vunpack.c.h.b16 %v1070
        %v1137 = vunpack.c.l.b16 %v1071
        %v1138 = vunpack.c.h.b16 %v1071
        %v1139 = vunpack.c.l.b16 %v1072
        %v1140 = vunpack.c.h.b16 %v1072
        %v1141 = vunpack.c.l.b16 %v1073
        %v1142 = vunpack.c.h.b16 %v1073
        %v1143 = vunpack.c.l.b16 %v1074
        %v1144 = vunpack.c.h.b16 %v1074
        %v1145 = vunpack.c.l.b16 %v1075
        %v1146 = vunpack.c.h.b16 %v1075
        %v1147 = vunpack.c.l.b16 %v1076
        %v1148 = vunpack.c.h.b16 %v1076
        %v1149 = vunpack.c.l.b16 %v1077
        %v1150 = vunpack.c.h.b16 %v1077
        %v1151 = vpack.c.b16 %v1117, %v1115
        %v1152 = vpack.c.b16 %v1118, %v1116
        %v1153 = vpack.c.b16 %v1121, %v1119
        %v1154 = vpack.c.b16 %v1122, %v1120
        %v1155 = vpack.c.b16 %v1125, %v1123
        %v1156 = vpack.c.b16 %v1126, %v1124
        %v1157 = vpack.c.b16 %v1129, %v1127
        %v1158 = vpack.c.b16 %v1130, %v1128
        %v1159 = vpack.c.b16 %v1133, %v1131
        %v1160 = vpack.c.b16 %v1134, %v1132
        %v1161 = vpack.c.b16 %v1137, %v1135
        %v1162 = vpack.c.b16 %v1138, %v1136
        %v1163 = vpack.c.b16 %v1141, %v1139
        %v1164 = vpack.c.b16 %v1142, %v1140
        %v1165 = vpack.c.b16 %v1145, %v1143
        %v1166 = vpack.c.b16 %v1146, %v1144
        %v1167 = vpack.c.b16 %v1149, %v1147
        %v1168 = vpack.c.b16 %v1150, %v1148
        %v1188 = vsel %vm739, %v1095, 0
        %1190 = vmatprep.subr.bf16.mxu0 %v1166
        %1191 = vmatpush1.bf16.msra.mxu0 %v1165
        %1192 = vmatprep.subr.bf16.mxu0 %v1164
        %1193 = vmatpush1.bf16.msra.mxu0 %v1163
        %1194 = vmatprep.subr.bf16.mxu0 %v1162
        %1195 = vmatpush1.bf16.msra.mxu0 %v1161
        %1196 = vmatprep.subr.bf16.mxu0 %v1160
        %1197 = vmatpush1.bf16.msra.mxu0 %v1159
        %1198 = vmatprep.subr.bf16.mxu0 %v1158
        %1199 = vmatpush1.bf16.msra.mxu0 %v1157
        %1200 = vmatprep.subr.bf16.mxu0 %v1156
        %1201 = vmatpush1.bf16.msra.mxu0 %v1155
        %1202 = vmatprep.subr.bf16.mxu0 %v1154
        %1203 = vmatpush1.bf16.msra.mxu0 %v1153
        %1204 = vmatprep.subr.bf16.mxu0 %v1152
        %1205 = vmatpush1.bf16.msra.mxu0 %v1151
        %1206 = vmatprep.subr.bf16.mxu0 0
        %1207 = vmatpush2.bf16.msra.mxu0 0
        %1208 = vmatprep.subr.bf16.mxu0 0
        %1209 = vmatpush2.bf16.msra.mxu0 0
        %1210 = vmatprep.subr.bf16.mxu0 0
        %1211 = vmatpush2.bf16.msra.mxu0 0
        %1212 = vmatprep.subr.bf16.mxu0 0
        %1213 = vmatpush2.bf16.msra.mxu0 0
        %1214 = vmatprep.subr.bf16.mxu0 0
        %1215 = vmatpush2.bf16.msra.mxu0 0
        %1216 = vmatprep.subr.bf16.mxu0 0
        %1217 = vmatpush2.bf16.msra.mxu0 0
        %1218 = vmatprep.subr.bf16.mxu0 0
        %1219 = vmatpush2.bf16.msra.mxu0 0
        %1220 = vmatprep.subr.bf16.mxu0 %v1168
        %1221 = vmatpush2.bf16.msra.mxu0 %v1167
        %1222 = vmatprep.mubr.bf16.mxu0 %v1188
        %1223 = vmatmul.mubr.bf16.gmra.mxu0 %v1094
        %v1224 = vpop.f32.mrf.mxu0
        %v1225 = vadd.f32 %v1081, %v1224
        %v1226 = vpop.f32.mrf.mxu0
        %v1227 = vadd.f32 %v1081, %v1226
        %v1228 = vpop.f32.mrf.mxu0
        %v1229 = vadd.f32 %v1086, %v1228
        %v1230 = vpop.f32.mrf.mxu0
        %v1231 = vadd.f32 %v1086, %v1230
        %1232 = vdwg.mxu0
        %v1233 = vld [vmem:[%s252] sm:$0xff]
        %v1234 = vld [vmem:[%s252 + $0x8] sm:$0xff]
        %v1235 = vunpack.c.l.bf16 %v1233
        %v1236 = vunpack.c.h.bf16 %v1233
        %v1237 = vunpack.c.l.bf16 %v1234
        %v1238 = vunpack.c.h.bf16 %v1234
        %v1239 = vadd.f32 %v1225, %v1235
        %v1240 = vadd.f32 %v1227, %v1236
        %v1241 = vadd.f32 %v1229, %v1237
        %v1242 = vadd.f32 %v1231, %v1238
        %v1243 = vmax.f32 %v1239, 0.0
        %v1244 = vmax.f32 %v1240, 0.0
        %v1245 = vmax.f32 %v1241, 0.0
        %v1246 = vmax.f32 %v1242, 0.0
        %1247 = vst [vmem:[%s247] sm:$0xff] %v1243
        %1248 = vst [vmem:[%s247 + $0x8] sm:$0xff] %v1244
        %1249 = vst [vmem:[%s247 + $0x10] sm:$0xff] %v1245
        %1250 = vst [vmem:[%s247 + $0x18] sm:$0xff] %v1246
        %s1251 = sand.u32 %s139, 1
        %s1252 = scalar_lea.sflag [#allocation7], %s1251
        %s1253 = sand.u32 %s139, 1
        %s1254 = smul.addr %s1253, 32
        %s1255 = scalar_lea.vmem [#allocation10], %s1254
        // Predicated region
        $region49: #{tpu_custom_call.1} parent=39 // pred_check
          %p1256 = pneg %p149
        $region50: #{tpu_custom_call.1} parent=39 // pred_check_branch
          %1258 = sbr.rel (%p1256) target = $region52
        $region51: #{tpu_custom_call.1} parent=39 // pred_region
          %s1260 = ssub.s32 512, 512
          %1261 = vsyncadd %s1252, %s1260
          %s1262 = smul.addr %s21, 4
          %s1263 = smul.addr %s1262, 128
          %s1264 = scalar_lea.hbm %s5, %s1263
          %s1265 = sshll.u32 %s1255, 4
          %s1266 = int_to_ptr.vmem [resolvable:$true] %s1265
          %1271 = dma.vmem_to_hbm [thread:$0]  %s1266, 512, %s1264, %s1252, 256, 256, 16
        $region52: #{tpu_custom_call.1} parent=39 // pred_fallthru
          _
      $region40: #{tpu_custom_call.1} parent=5 // pred_fallthru
        _
      %p1272 = scmp.le.s32.totalorder 2, %s16
      // Predicated region
      $region53: #{tpu_custom_call.1} parent=5 // pred_check
        %p1273 = pneg %p1272
      $region54: #{tpu_custom_call.1} parent=5 // pred_check_branch
        %1275 = sbr.rel (%p1273) target = $region56
      $region55: #{tpu_custom_call.1} parent=5 // pred_region
        %s1276 = ssub.s32 %s16, 2
        // Predicated region
        $region57: #{tpu_custom_call.1} parent=55 // pred_check
          %p1277 = pneg %p155
        $region58: #{tpu_custom_call.1} parent=55 // pred_check_branch
          %1279 = sbr.rel (%p1277) target = $region60
        $region59: #{tpu_custom_call.1} parent=55 // pred_region
          %s1280 = sand.u32 %s140, 1
          %s1281 = scalar_lea.sflag [#allocation7], %s1280
          %s1282 = sand.u32 %s140, 1
          %s1283 = smul.addr %s1282, 32
          %s1284 = scalar_lea.vmem [#allocation10], %s1283
          %1285 = dma.done %s1281, 512
        $region60: #{tpu_custom_call.1} parent=55 // pred_fallthru
          _
      $region56: #{tpu_custom_call.1} parent=5 // pred_fallthru
        _
    $region6: #{tpu_custom_call.1} parent=1 // loop_footer
      %s20 = sadd.s32 1, %s16
    $region7: #{tpu_custom_call.1} parent=1 // loop_footer_branch
      %15 = sbr.rel target = $region3
    $region8: #{tpu_custom_call.1} parent=1 // loop_exit
      _
    %1286 = vsyncpa [#allocation6], 1
    %s1287 = scalar_lea.sflag [#allocation6], 1
    %1288 = vsyncpa %s1287, 1
    %1289 = vsyncpa [#allocation9], 1
    %1290 = vsyncpa [#allocation7], 1
    %s1291 = scalar_lea.sflag [#allocation7], 1
    %1292 = vsyncpa %s1291, 1

</llo_original>
